<compile_context>
chip_gen: v7x
topology: tpu7x:2x2x1
jax: 0.10.0
libtpu: 0.0.40
codegen_flags: <defaults>
</compile_context>

<pallas_src>
import jax
import jax.numpy as jnp
from jax.experimental import pallas as pl
from jax.experimental.pallas import tpu as pltpu

# ---- static feature sizes (from the module definition) ----
SEQ_FEAT = 22            # wks feature width
TRI_FEAT = 32 + 100      # cent_norm feature width (132)
JAC_SIZE = 32            # output of jac_fc
POSE_DIM = 156           # pose_joints width (unused in compute)
J0_DIM = 9               # flattened 3x3 jacobian
FC1_IN = JAC_SIZE + TRI_FEAT + SEQ_FEAT + 1   # 187
H1, H2, H3 = 512, 256, 128
W4_PAD = 128             # fc4 weight columns padded for the MXU matmul only

COMPUTE_DTYPE = jnp.bfloat16   # trunk matmul dtype (f32 accumulation)
TARGET_ROWS = 4096             # (time x face) rows per trunk grid step
FACE_ROWS_A = 512              # target faces per step for the per-face kernel


def _round_up(x, m):
    return (x + m - 1) // m * m


def _const_spec(shape):
    """Full-array block that revisits index 0 every grid step (stays resident)."""
    nd = len(shape)
    return pl.BlockSpec(shape, lambda *_: (0,) * nd)


# --------------------------------------------------------------------------
# Kernel A: per-face, time-invariant part of fc1 (jac_fc + cent/wks partials)
# --------------------------------------------------------------------------
def _face_part_kernel(j0_ref, cent_ref, wks_ref,
                      jw1_ref, jb1_ref, jw2_ref, jb2_ref,
                      w1j_ref, w1c_ref, w1w_ref, b1_ref,
                      fp_ref):
    # jac_fc: (TF_A, 9) -> relu(fc1) -> fc2 -> (TF_A, 32); f32 MXU matmuls at
    # Mosaic's default f32 precision (reference uses Precision.HIGHEST).
    h = jnp.dot(j0_ref[...], jw1_ref[...],
                preferred_element_type=jnp.float32) + jb1_ref[...]
    h = jnp.maximum(h, 0.0)
    j0_feat = jnp.dot(h, jw2_ref[...],
                      preferred_element_type=jnp.float32) + jb2_ref[...]
    # time-invariant fc1 pre-activation, bias folded in
    fp_ref[...] = (
        jnp.dot(j0_feat, w1j_ref[...], preferred_element_type=jnp.float32)
        + jnp.dot(cent_ref[...], w1c_ref[...], preferred_element_type=jnp.float32)
        + jnp.dot(wks_ref[...], w1w_ref[...], preferred_element_type=jnp.float32)
        + b1_ref[...])


# --------------------------------------------------------------------------
# Kernel B: per-(time, face) trunk   fc1(relu) -> fc2 -> fc3 -> fc4 + residual
# --------------------------------------------------------------------------
def _trunk_kernel(tp_ref, fp_ref, j0_ref,
                  w2_ref, b2_ref, w3_ref, b3_ref, w4_ref, b4_ref,
                  out_ref):
    tt = tp_ref.shape[0]
    tf = fp_ref.shape[0]

    # fc1 activation, built time-major so the store order already matches the
    # (T, F, 9) output (folds the final permute into the kernel).  f32 add +
    # relu, then bf16 for the MXU.  tf is a multiple of 8, so the
    # (tt, tf, 512) -> (tt*tf, 512) collapse is layout preserving.
    a1 = jnp.maximum(tp_ref[...][:, None, :] + fp_ref[...][None, :, :], 0.0)
    a1 = a1.reshape(tt * tf, H1).astype(COMPUTE_DTYPE)

    a2 = jnp.dot(a1, w2_ref[...], preferred_element_type=jnp.float32) + b2_ref[...]
    a2 = jnp.maximum(a2, 0.0).astype(COMPUTE_DTYPE)

    a3 = jnp.dot(a2, w3_ref[...], preferred_element_type=jnp.float32) + b3_ref[...]
    a3 = jnp.maximum(a3, 0.0).astype(COMPUTE_DTYPE)

    # fc4 runs on 128 padded weight columns (same MXU cost as N=9); the pad
    # lanes are dropped before the dense (tt, tf, 9) store.
    dj = jnp.dot(a3, w4_ref[...], preferred_element_type=jnp.float32) + b4_ref[...]
    dj = dj.reshape(tt, tf, W4_PAD)[:, :, :J0_DIM]

    # residual with the rest-pose jacobian; written directly in (t, f, 9)
    # order so no XLA permute / padded-slab repass is needed afterwards.
    out_ref[...] = dj + j0_ref[...][None, :, :]


# --------------------------------------------------------------------------
# Wrapper
# --------------------------------------------------------------------------
@jax.jit
def d4d_posing_forward(params, j0, cent_norm, wks, pose_joints, betas, times):
    """JAX wrapper reproducing D4DPosingNetwork.forward semantics.

    j0          : (F, 3, 3) float32
    cent_norm   : (F, 132)  float32
    wks         : (F, 22)   float32
    pose_joints : (T, 156)  float32   (unused by the compute path)
    betas       : unused (betas_size = 0)
    times       : (T,)      float32
    returns     : (T, F, 3, 3) float32
    """
    # TODO(synk): the PyTorch forward calls print(...)/exit() and builds an
    # unused pose_joints_face tensor; those debug-only lines are skipped.
    del pose_joints, betas
    F = j0.shape[0]
    T = times.shape[0]

    # ---- trunk tiles: TT along time, TF along faces (TT*TF ~ TARGET_ROWS) ----
    TT = min(_round_up(T, 8), 128)
    TF = min(_round_up(F, 8), max(8, _round_up(TARGET_ROWS // TT, 8)))
    # Kernel A gets its own, larger face tile (a multiple of TF, ~512 rows) so
    # its matmuls fill the MXU and its grid-step count drops ~TF_A/TF x.
    TF_A = TF * max(1, min(-(-F // TF), max(1, FACE_ROWS_A // TF)))
    Fp = _round_up(F, TF_A)      # multiple of both TF_A and TF
    Tp = _round_up(T, TT)

    flat_j0 = j0.reshape(F, J0_DIM).astype(jnp.float32)
    cent = cent_norm.astype(jnp.float32)
    wks_f = wks.astype(jnp.float32)
    times_f = times.astype(jnp.float32)

    if Fp > F:
        fpad = ((0, Fp - F), (0, 0))
        flat_j0 = jnp.pad(flat_j0, fpad)
        cent = jnp.pad(cent, fpad)
        wks_f = jnp.pad(wks_f, fpad)
    if Tp > T:
        times_f = jnp.pad(times_f, (0, Tp - T))

    (jw1, jb1, jw2, jb2, w1, b1, w2, b2, w3, b3, w4, b4) = params

    # fc1 weight rows ordered as the forward's torch.cat:
    # [jac_feat(32) | cent_norm(132) | wks(22) | time(1)]
    w1j = w1[:JAC_SIZE]
    w1c = w1[JAC_SIZE:JAC_SIZE + TRI_FEAT]
    w1w = w1[JAC_SIZE + TRI_FEAT:JAC_SIZE + TRI_FEAT + SEQ_FEAT]
    w1t = w1[JAC_SIZE + TRI_FEAT + SEQ_FEAT:]            # (1, 512)

    # ---- kernel A: per-face, time-invariant fc1 partial (jac_fc hoisted) ----
    row_fa = lambda width: pl.BlockSpec((TF_A, width), lambda i: (i, 0))
    face_part = pl.pallas_call(
        _face_part_kernel,
        out_shape=jax.ShapeDtypeStruct((Fp, H1), jnp.float32),
        grid=(Fp // TF_A,),
        in_specs=[
            row_fa(J0_DIM), row_fa(TRI_FEAT), row_fa(SEQ_FEAT),
            _const_spec(jw1.shape), _const_spec(jb1.shape),
            _const_spec(jw2.shape), _const_spec(jb2.shape),
            _const_spec(w1j.shape), _const_spec(w1c.shape),
            _const_spec(w1w.shape), _const_spec(b1.shape),
        ],
        out_specs=row_fa(H1),
        compiler_params=pltpu.CompilerParams(
            dimension_semantics=("parallel",)),
    )(flat_j0, cent, wks_f, jw1, jb1, jw2, jb2, w1j, w1c, w1w, b1)

    # time-dependent part of fc1: outer(times, W1_time)   (Tp, 512), tiny
    time_part = times_f[:, None] * w1t

    # bf16 trunk weights (f32 accumulation in-kernel); fc4 padded to 128 cols
    # for the matmul only (the output array itself is unpadded, width 9).
    w2c = w2.astype(COMPUTE_DTYPE)
    w3c = w3.astype(COMPUTE_DTYPE)
    w4c = jnp.pad(w4, ((0, 0), (0, W4_PAD - J0_DIM))).astype(COMPUTE_DTYPE)
    b4p = jnp.pad(b4, ((0, 0), (0, W4_PAD - J0_DIM)))

    # ---- kernel B: (time_tile, face_tile) grid over the trunk ----
    out = pl.pallas_call(
        _trunk_kernel,
        out_shape=jax.ShapeDtypeStruct((Tp, Fp, J0_DIM), jnp.float32),
        grid=(Tp // TT, Fp // TF),
        in_specs=[
            pl.BlockSpec((TT, H1), lambda t, f: (t, 0)),        # time_part
            pl.BlockSpec((TF, H1), lambda t, f: (f, 0)),        # face_part
            pl.BlockSpec((TF, J0_DIM), lambda t, f: (f, 0)),    # j0 residual
            _const_spec(w2c.shape), _const_spec(b2.shape),
            _const_spec(w3c.shape), _const_spec(b3.shape),
            _const_spec(w4c.shape), _const_spec(b4p.shape),
        ],
        out_specs=pl.BlockSpec((TT, TF, J0_DIM), lambda t, f: (t, f, 0)),
        compiler_params=pltpu.CompilerParams(
            dimension_semantics=("parallel", "parallel"),
            vmem_limit_bytes=48 * 1024 * 1024),
    )(time_part, face_part, flat_j0, w2c, b2, w3c, b3, w4c, b4p)

    # Output is already in (T, F, 9) order; drop padding, reshape to (T,F,3,3).
    return out[:T, :F].reshape(T, F, 3, 3)


# --------------------------------------------------------------------------
# Parameter init (deterministic, PyTorch-style U(-1/sqrt(fan_in), ...))
# --------------------------------------------------------------------------
def _linear_params(key, fan_in, fan_out):
    kw, kb = jax.random.split(key)
    bound = 1.0 / jnp.sqrt(jnp.float32(fan_in))
    w = jax.random.uniform(kw, (fan_in, fan_out), jnp.float32, -bound, bound)
    b = jax.random.uniform(kb, (1, fan_out), jnp.float32, -bound, bound)
    return w, b


def init_params(key):
    keys = jax.random.split(key, 6)
    jw1, jb1 = _linear_params(keys[0], J0_DIM, 64)    # jac_fc.fc1
    jw2, jb2 = _linear_params(keys[1], 64, JAC_SIZE)  # jac_fc.fc2
    w1, b1 = _linear_params(keys[2], FC1_IN, H1)      # fc1 (187 -> 512)
    w2, b2 = _linear_params(keys[3], H1, H2)          # fc2
    w3, b3 = _linear_params(keys[4], H2, H3)          # fc3
    w4, b4 = _linear_params(keys[5], H3, J0_DIM)      # fc4
    return (jw1, jb1, jw2, jb2, w1, b1, w2, b2, w3, b3, w4, b4)


# --------------------------------------------------------------------------
# Pure-jnp reference (same math / same trunk precision policy) for the check
# --------------------------------------------------------------------------
def _reference_forward(params, j0, cent_norm, wks, times):
    (jw1, jb1, jw2, jb2, w1, b1, w2, b2, w3, b3, w4, b4) = params
    F = j0.shape[0]
    T = times.shape[0]
    hi = jax.lax.Precision.HIGHEST

    flat_j0 = j0.reshape(F, J0_DIM)
    h = jax.nn.relu(jnp.dot(flat_j0, jw1, precision=hi) + jb1)
    j0_feat = jnp.dot(h, jw2, precision=hi) + jb2

    xj0 = jnp.broadcast_to(flat_j0[:, None, :], (F, T, J0_DIM))
    cent_t = jnp.broadcast_to(cent_norm[:, None, :], (F, T, TRI_FEAT))
    wks_t = jnp.broadcast_to(wks[:, None, :], (F, T, SEQ_FEAT))
    j0f_t = jnp.broadcast_to(j0_feat[:, None, :], (F, T, JAC_SIZE))
    time_t = jnp.broadcast_to(times[None, :, None], (F, T, 1))
    xt = jnp.concatenate([j0f_t, cent_t, wks_t, time_t], -1)

    a1 = jax.nn.relu(jnp.dot(xt, w1, precision=hi) + b1).astype(COMPUTE_DTYPE)
    a2 = jax.nn.relu(jnp.dot(a1, w2.astype(COMPUTE_DTYPE),
                             preferred_element_type=jnp.float32) + b2)
    a3 = jax.nn.relu(jnp.dot(a2.astype(COMPUTE_DTYPE), w3.astype(COMPUTE_DTYPE),
                             preferred_element_type=jnp.float32) + b3)
    dj = jnp.dot(a3.astype(COMPUTE_DTYPE), w4.astype(COMPUTE_DTYPE),
                 preferred_element_type=jnp.float32) + b4
    J = xj0 + dj
    return J.reshape(F, T, 3, 3).transpose(1, 0, 2, 3)


if __name__ == "__main__":
    key = jax.random.PRNGKey(0)
    k_param, k_j0, k_cent, k_wks, k_pose, k_time = jax.random.split(key, 6)

    F = 2   # number of faces
    T = 8   # number of time samples

    params = init_params(k_param)
    j0 = jax.random.normal(k_j0, (F, 3, 3), jnp.float32)
    cent_norm = jax.random.normal(k_cent, (F, TRI_FEAT), jnp.float32)
    wks = jax.random.normal(k_wks, (F, SEQ_FEAT), jnp.float32)
    pose_joints = jax.random.normal(k_pose, (T, POSE_DIM), jnp.float32)  # unused
    betas = jnp.zeros((F, 0), jnp.float32)                                # betas_size = 0
    times = jnp.linspace(0.0, 1.0, T, dtype=jnp.float32)

    J = d4d_posing_forward(params, j0, cent_norm, wks, pose_joints, betas, times)
    J = jax.block_until_ready(J)
    assert J.shape == (T, F, 3, 3), J.shape

    J_ref = _reference_forward(params, j0, cent_norm, wks, times)
    max_err = float(jnp.max(jnp.abs(J - J_ref)))
    assert jnp.allclose(J, J_ref, atol=1e-2, rtol=1e-2), max_err

    print("KERNEL_OK")
</pallas_src>

<mosaic_0001>
module attributes {stable_mosaic.version = 11 : i64} {
  func.func @_face_part_kernel(%arg0: i32, %arg1: memref<8x9xf32, #tpu.memory_space<vmem>>, %arg2: memref<8x132xf32, #tpu.memory_space<vmem>>, %arg3: memref<8x22xf32, #tpu.memory_space<vmem>>, %arg4: memref<9x64xf32, #tpu.memory_space<vmem>>, %arg5: memref<1x64xf32, #tpu.memory_space<vmem>>, %arg6: memref<64x32xf32, #tpu.memory_space<vmem>>, %arg7: memref<1x32xf32, #tpu.memory_space<vmem>>, %arg8: memref<32x512xf32, #tpu.memory_space<vmem>>, %arg9: memref<132x512xf32, #tpu.memory_space<vmem>>, %arg10: memref<22x512xf32, #tpu.memory_space<vmem>>, %arg11: memref<1x512xf32, #tpu.memory_space<vmem>>, %arg12: memref<8x512xf32, #tpu.memory_space<vmem>>) attributes {dimension_semantics = [#tpu.dimension_semantics<parallel>], iteration_bounds = array<i64: 1>, scalar_prefetch = 0 : i64, scratch_operands = 0 : i64, tpu.core_type = #tpu.core_type<tc>, window_params = [{transform_indices = @transform_0, window_bounds = array<i64: 8, 9>}, {transform_indices = @transform_1, window_bounds = array<i64: 8, 132>}, {transform_indices = @transform_2, window_bounds = array<i64: 8, 22>}, {pipeline_mode = #tpu.pipeline_mode<synchronous>, transform_indices = @transform_3, window_bounds = array<i64: 9, 64>}, {pipeline_mode = #tpu.pipeline_mode<synchronous>, transform_indices = @transform_4, window_bounds = array<i64: 1, 64>}, {pipeline_mode = #tpu.pipeline_mode<synchronous>, transform_indices = @transform_5, window_bounds = array<i64: 64, 32>}, {pipeline_mode = #tpu.pipeline_mode<synchronous>, transform_indices = @transform_6, window_bounds = array<i64: 1, 32>}, {pipeline_mode = #tpu.pipeline_mode<synchronous>, transform_indices = @transform_7, window_bounds = array<i64: 32, 512>}, {pipeline_mode = #tpu.pipeline_mode<synchronous>, transform_indices = @transform_8, window_bounds = array<i64: 132, 512>}, {pipeline_mode = #tpu.pipeline_mode<synchronous>, transform_indices = @transform_9, window_bounds = array<i64: 22, 512>}, {pipeline_mode = #tpu.pipeline_mode<synchronous>, transform_indices = @transform_10, window_bounds = array<i64: 1, 512>}, {transform_indices = @transform_11, window_bounds = array<i64: 8, 512>}]} {
    %c0 = arith.constant 0 : index
    %c0_0 = arith.constant 0 : index
    %0 = vector.load %arg1[%c0, %c0_0] : memref<8x9xf32, #tpu.memory_space<vmem>>, vector<8x9xf32>
    %c0_1 = arith.constant 0 : index
    %c0_2 = arith.constant 0 : index
    %1 = vector.load %arg4[%c0_1, %c0_2] : memref<9x64xf32, #tpu.memory_space<vmem>>, vector<9x64xf32>
    %cst = arith.constant dense<0.000000e+00> : vector<8x64xf32>
    %2 = tpu.matmul %0, %1, %cst {dimension_numbers = #tpu.dot_dimension_numbers<[1], [0], [0], [1], [0, 0, 1, 1], [], []>} : vector<8x9xf32>, vector<9x64xf32>, vector<8x64xf32> -> vector<8x64xf32>
    %c0_3 = arith.constant 0 : index
    %c0_4 = arith.constant 0 : index
    %3 = vector.load %arg5[%c0_3, %c0_4] : memref<1x64xf32, #tpu.memory_space<vmem>>, vector<1x64xf32>
    %4 = vector.broadcast %3 : vector<1x64xf32> to vector<8x64xf32>
    %5 = arith.addf %2, %4 : vector<8x64xf32>
    %cst_5 = arith.constant 0.000000e+00 : f32
    %6 = vector.broadcast %cst_5 : f32 to vector<8x64xf32>
    %7 = arith.maximumf %5, %6 : vector<8x64xf32>
    %c0_6 = arith.constant 0 : index
    %c0_7 = arith.constant 0 : index
    %8 = vector.load %arg6[%c0_6, %c0_7] : memref<64x32xf32, #tpu.memory_space<vmem>>, vector<64x32xf32>
    %cst_8 = arith.constant dense<0.000000e+00> : vector<8x32xf32>
    %9 = tpu.matmul %7, %8, %cst_8 {dimension_numbers = #tpu.dot_dimension_numbers<[1], [0], [0], [1], [0, 0, 1, 1], [], []>} : vector<8x64xf32>, vector<64x32xf32>, vector<8x32xf32> -> vector<8x32xf32>
    %c0_9 = arith.constant 0 : index
    %c0_10 = arith.constant 0 : index
    %10 = vector.load %arg7[%c0_9, %c0_10] : memref<1x32xf32, #tpu.memory_space<vmem>>, vector<1x32xf32>
    %11 = vector.broadcast %10 : vector<1x32xf32> to vector<8x32xf32>
    %12 = arith.addf %9, %11 : vector<8x32xf32>
    %c0_11 = arith.constant 0 : index
    %c0_12 = arith.constant 0 : index
    %13 = vector.load %arg8[%c0_11, %c0_12] : memref<32x512xf32, #tpu.memory_space<vmem>>, vector<32x512xf32>
    %cst_13 = arith.constant dense<0.000000e+00> : vector<8x512xf32>
    %14 = tpu.matmul %12, %13, %cst_13 {dimension_numbers = #tpu.dot_dimension_numbers<[1], [0], [0], [1], [0, 0, 1, 1], [], []>} : vector<8x32xf32>, vector<32x512xf32>, vector<8x512xf32> -> vector<8x512xf32>
    %c0_14 = arith.constant 0 : index
    %c0_15 = arith.constant 0 : index
    %15 = vector.load %arg2[%c0_14, %c0_15] : memref<8x132xf32, #tpu.memory_space<vmem>>, vector<8x132xf32>
    %c0_16 = arith.constant 0 : index
    %c0_17 = arith.constant 0 : index
    %16 = vector.load %arg9[%c0_16, %c0_17] : memref<132x512xf32, #tpu.memory_space<vmem>>, vector<132x512xf32>
    %cst_18 = arith.constant dense<0.000000e+00> : vector<8x512xf32>
    %17 = tpu.matmul %15, %16, %cst_18 {dimension_numbers = #tpu.dot_dimension_numbers<[1], [0], [0], [1], [0, 0, 1, 1], [], []>} : vector<8x132xf32>, vector<132x512xf32>, vector<8x512xf32> -> vector<8x512xf32>
    %18 = arith.addf %14, %17 : vector<8x512xf32>
    %c0_19 = arith.constant 0 : index
    %c0_20 = arith.constant 0 : index
    %19 = vector.load %arg3[%c0_19, %c0_20] : memref<8x22xf32, #tpu.memory_space<vmem>>, vector<8x22xf32>
    %c0_21 = arith.constant 0 : index
    %c0_22 = arith.constant 0 : index
    %20 = vector.load %arg10[%c0_21, %c0_22] : memref<22x512xf32, #tpu.memory_space<vmem>>, vector<22x512xf32>
    %cst_23 = arith.constant dense<0.000000e+00> : vector<8x512xf32>
    %21 = tpu.matmul %19, %20, %cst_23 {dimension_numbers = #tpu.dot_dimension_numbers<[1], [0], [0], [1], [0, 0, 1, 1], [], []>} : vector<8x22xf32>, vector<22x512xf32>, vector<8x512xf32> -> vector<8x512xf32>
    %22 = arith.addf %18, %21 : vector<8x512xf32>
    %c0_24 = arith.constant 0 : index
    %c0_25 = arith.constant 0 : index
    %23 = vector.load %arg11[%c0_24, %c0_25] : memref<1x512xf32, #tpu.memory_space<vmem>>, vector<1x512xf32>
    %24 = vector.broadcast %23 : vector<1x512xf32> to vector<8x512xf32>
    %25 = arith.addf %22, %24 : vector<8x512xf32>
    %c0_26 = arith.constant 0 : index
    %c0_27 = arith.constant 0 : index
    %26 = vector.load %arg12[%c0_26, %c0_27] : memref<8x512xf32, #tpu.memory_space<vmem>>, vector<8x512xf32>
    tpu.vector_store %arg12[%c0_26, %c0_27], %25 {strides = array<i32>} : memref<8x512xf32, #tpu.memory_space<vmem>>, vector<8x512xf32>,
    return
  }
  func.func @transform_0(%arg0: i32) -> (i32, i32) {
    %c0_i32 = arith.constant 0 : i32
    %c0_i32_0 = arith.constant 0 : i32
    return %arg0, %c0_i32 : i32, i32
  }
  func.func @transform_1(%arg0: i32) -> (i32, i32) {
    %c0_i32 = arith.constant 0 : i32
    %c0_i32_0 = arith.constant 0 : i32
    return %arg0, %c0_i32 : i32, i32
  }
  func.func @transform_2(%arg0: i32) -> (i32, i32) {
    %c0_i32 = arith.constant 0 : i32
    %c0_i32_0 = arith.constant 0 : i32
    return %arg0, %c0_i32 : i32, i32
  }
  func.func @transform_3(%arg0: i32) -> (i32, i32) {
    %c0_i32 = arith.constant 0 : i32
    %c0_i32_0 = arith.constant 0 : i32
    %c0_i32_1 = arith.constant 0 : i32
    return %c0_i32, %c0_i32_0 : i32, i32
  }
  func.func @transform_4(%arg0: i32) -> (i32, i32) {
    %c0_i32 = arith.constant 0 : i32
    %c0_i32_0 = arith.constant 0 : i32
    %c0_i32_1 = arith.constant 0 : i32
    return %c0_i32, %c0_i32_0 : i32, i32
  }
  func.func @transform_5(%arg0: i32) -> (i32, i32) {
    %c0_i32 = arith.constant 0 : i32
    %c0_i32_0 = arith.constant 0 : i32
    %c0_i32_1 = arith.constant 0 : i32
    return %c0_i32, %c0_i32_0 : i32, i32
  }
  func.func @transform_6(%arg0: i32) -> (i32, i32) {
    %c0_i32 = arith.constant 0 : i32
    %c0_i32_0 = arith.constant 0 : i32
    %c0_i32_1 = arith.constant 0 : i32
    return %c0_i32, %c0_i32_0 : i32, i32
  }
  func.func @transform_7(%arg0: i32) -> (i32, i32) {
    %c0_i32 = arith.constant 0 : i32
    %c0_i32_0 = arith.constant 0 : i32
    %c0_i32_1 = arith.constant 0 : i32
    return %c0_i32, %c0_i32_0 : i32, i32
  }
  func.func @transform_8(%arg0: i32) -> (i32, i32) {
    %c0_i32 = arith.constant 0 : i32
    %c0_i32_0 = arith.constant 0 : i32
    %c0_i32_1 = arith.constant 0 : i32
    return %c0_i32, %c0_i32_0 : i32, i32
  }
  func.func @transform_9(%arg0: i32) -> (i32, i32) {
    %c0_i32 = arith.constant 0 : i32
    %c0_i32_0 = arith.constant 0 : i32
    %c0_i32_1 = arith.constant 0 : i32
    return %c0_i32, %c0_i32_0 : i32, i32
  }
  func.func @transform_10(%arg0: i32) -> (i32, i32) {
    %c0_i32 = arith.constant 0 : i32
    %c0_i32_0 = arith.constant 0 : i32
    %c0_i32_1 = arith.constant 0 : i32
    return %c0_i32, %c0_i32_0 : i32, i32
  }
  func.func @transform_11(%arg0: i32) -> (i32, i32) {
    %c0_i32 = arith.constant 0 : i32
    %c0_i32_0 = arith.constant 0 : i32
    return %arg0, %c0_i32 : i32, i32
  }
}

module attributes {stable_mosaic.version = 11 : i64} {
  func.func @_trunk_kernel(%arg0: i32, %arg1: i32, %arg2: memref<8x512xf32, #tpu.memory_space<vmem>>, %arg3: memref<8x512xf32, #tpu.memory_space<vmem>>, %arg4: memref<8x9xf32, #tpu.memory_space<vmem>>, %arg5: memref<512x256xbf16, #tpu.memory_space<vmem>>, %arg6: memref<1x256xf32, #tpu.memory_space<vmem>>, %arg7: memref<256x128xbf16, #tpu.memory_space<vmem>>, %arg8: memref<1x128xf32, #tpu.memory_space<vmem>>, %arg9: memref<128x128xbf16, #tpu.memory_space<vmem>>, %arg10: memref<1x128xf32, #tpu.memory_space<vmem>>, %arg11: memref<8x8x9xf32, #tpu.memory_space<vmem>>) attributes {dimension_semantics = [#tpu.dimension_semantics<parallel>, #tpu.dimension_semantics<parallel>], iteration_bounds = array<i64: 1, 1>, scalar_prefetch = 0 : i64, scratch_operands = 0 : i64, tpu.core_type = #tpu.core_type<tc>, window_params = [{transform_indices = @transform_0, window_bounds = array<i64: 8, 512>}, {transform_indices = @transform_1, window_bounds = array<i64: 8, 512>}, {transform_indices = @transform_2, window_bounds = array<i64: 8, 9>}, {pipeline_mode = #tpu.pipeline_mode<synchronous>, transform_indices = @transform_3, window_bounds = array<i64: 512, 256>}, {pipeline_mode = #tpu.pipeline_mode<synchronous>, transform_indices = @transform_4, window_bounds = array<i64: 1, 256>}, {pipeline_mode = #tpu.pipeline_mode<synchronous>, transform_indices = @transform_5, window_bounds = array<i64: 256, 128>}, {pipeline_mode = #tpu.pipeline_mode<synchronous>, transform_indices = @transform_6, window_bounds = array<i64: 1, 128>}, {pipeline_mode = #tpu.pipeline_mode<synchronous>, transform_indices = @transform_7, window_bounds = array<i64: 128, 128>}, {pipeline_mode = #tpu.pipeline_mode<synchronous>, transform_indices = @transform_8, window_bounds = array<i64: 1, 128>}, {transform_indices = @transform_9, window_bounds = array<i64: 8, 8, 9>}]} {
    %c0 = arith.constant 0 : index
    %c0_0 = arith.constant 0 : index
    %0 = vector.load %arg2[%c0, %c0_0] : memref<8x512xf32, #tpu.memory_space<vmem>>, vector<8x512xf32>
    %1 = vector.shape_cast %0 : vector<8x512xf32> to vector<8x1x512xf32>
    %c0_1 = arith.constant 0 : index
    %c0_2 = arith.constant 0 : index
    %2 = vector.load %arg3[%c0_1, %c0_2] : memref<8x512xf32, #tpu.memory_space<vmem>>, vector<8x512xf32>
    %3 = vector.shape_cast %2 : vector<8x512xf32> to vector<1x8x512xf32>
    %4 = vector.broadcast %1 : vector<8x1x512xf32> to vector<8x8x512xf32>
    %5 = vector.broadcast %3 : vector<1x8x512xf32> to vector<8x8x512xf32>
    %6 = arith.addf %4, %5 : vector<8x8x512xf32>
    %cst = arith.constant 0.000000e+00 : f32
    %7 = vector.broadcast %cst : f32 to vector<8x8x512xf32>
    %8 = arith.maximumf %6, %7 : vector<8x8x512xf32>
    %9 = vector.shape_cast %8 : vector<8x8x512xf32> to vector<64x512xf32>
    %10 = arith.truncf %9 : vector<64x512xf32> to vector<64x512xbf16>
    %c0_3 = arith.constant 0 : index
    %c0_4 = arith.constant 0 : index
    %11 = vector.load %arg5[%c0_3, %c0_4] : memref<512x256xbf16, #tpu.memory_space<vmem>>, vector<512x256xbf16>
    %cst_5 = arith.constant dense<0.000000e+00> : vector<64x256xf32>
    %12 = tpu.matmul %10, %11, %cst_5 {dimension_numbers = #tpu.dot_dimension_numbers<[1], [0], [0], [1], [0, 0, 1, 1], [], []>} : vector<64x512xbf16>, vector<512x256xbf16>, vector<64x256xf32> -> vector<64x256xf32>
    %c0_6 = arith.constant 0 : index
    %c0_7 = arith.constant 0 : index
    %13 = vector.load %arg6[%c0_6, %c0_7] : memref<1x256xf32, #tpu.memory_space<vmem>>, vector<1x256xf32>
    %14 = vector.broadcast %13 : vector<1x256xf32> to vector<64x256xf32>
    %15 = arith.addf %12, %14 : vector<64x256xf32>
    %cst_8 = arith.constant 0.000000e+00 : f32
    %16 = vector.broadcast %cst_8 : f32 to vector<64x256xf32>
    %17 = arith.maximumf %15, %16 : vector<64x256xf32>
    %18 = arith.truncf %17 : vector<64x256xf32> to vector<64x256xbf16>
    %c0_9 = arith.constant 0 : index
    %c0_10 = arith.constant 0 : index
    %19 = vector.load %arg7[%c0_9, %c0_10] : memref<256x128xbf16, #tpu.memory_space<vmem>>, vector<256x128xbf16>
    %cst_11 = arith.constant dense<0.000000e+00> : vector<64x128xf32>
    %20 = tpu.matmul %18, %19, %cst_11 {dimension_numbers = #tpu.dot_dimension_numbers<[1], [0], [0], [1], [0, 0, 1, 1], [], []>} : vector<64x256xbf16>, vector<256x128xbf16>, vector<64x128xf32> -> vector<64x128xf32>
    %c0_12 = arith.constant 0 : index
    %c0_13 = arith.constant 0 : index
    %21 = vector.load %arg8[%c0_12, %c0_13] : memref<1x128xf32, #tpu.memory_space<vmem>>, vector<1x128xf32>
    %22 = vector.broadcast %21 : vector<1x128xf32> to vector<64x128xf32>
    %23 = arith.addf %20, %22 : vector<64x128xf32>
    %cst_14 = arith.constant 0.000000e+00 : f32
    %24 = vector.broadcast %cst_14 : f32 to vector<64x128xf32>
    %25 = arith.maximumf %23, %24 : vector<64x128xf32>
    %26 = arith.truncf %25 : vector<64x128xf32> to vector<64x128xbf16>
    %c0_15 = arith.constant 0 : index
    %c0_16 = arith.constant 0 : index
    %27 = vector.load %arg9[%c0_15, %c0_16] : memref<128x128xbf16, #tpu.memory_space<vmem>>, vector<128x128xbf16>
    %cst_17 = arith.constant dense<0.000000e+00> : vector<64x128xf32>
    %28 = tpu.matmul %26, %27, %cst_17 {dimension_numbers = #tpu.dot_dimension_numbers<[1], [0], [0], [1], [0, 0, 1, 1], [], []>} : vector<64x128xbf16>, vector<128x128xbf16>, vector<64x128xf32> -> vector<64x128xf32>
    %c0_18 = arith.constant 0 : index
    %c0_19 = arith.constant 0 : index
    %29 = vector.load %arg10[%c0_18, %c0_19] : memref<1x128xf32, #tpu.memory_space<vmem>>, vector<1x128xf32>
    %30 = vector.broadcast %29 : vector<1x128xf32> to vector<64x128xf32>
    %31 = arith.addf %28, %30 : vector<64x128xf32>
    %32 = vector.shape_cast %31 : vector<64x128xf32> to vector<8x8x128xf32>
    %33 = vector.extract_strided_slice %32 {offsets = [0, 0, 0], sizes = [8, 8, 9], strides = [1, 1, 1]} : vector<8x8x128xf32> to vector<8x8x9xf32>
    %c0_20 = arith.constant 0 : index
    %c0_21 = arith.constant 0 : index
    %34 = vector.load %arg4[%c0_20, %c0_21] : memref<8x9xf32, #tpu.memory_space<vmem>>, vector<8x9xf32>
    %35 = vector.shape_cast %34 : vector<8x9xf32> to vector<1x8x9xf32>
    %36 = vector.broadcast %35 : vector<1x8x9xf32> to vector<8x8x9xf32>
    %37 = arith.addf %33, %36 : vector<8x8x9xf32>
    %c0_22 = arith.constant 0 : index
    %c0_23 = arith.constant 0 : index
    %c0_24 = arith.constant 0 : index
    %38 = vector.load %arg11[%c0_22, %c0_23, %c0_24] : memref<8x8x9xf32, #tpu.memory_space<vmem>>, vector<8x8x9xf32>
    tpu.vector_store %arg11[%c0_22, %c0_23, %c0_24], %37 {strides = array<i32>} : memref<8x8x9xf32, #tpu.memory_space<vmem>>, vector<8x8x9xf32>,
    return
  }
  func.func @transform_0(%arg0: i32, %arg1: i32) -> (i32, i32) {
    %c0_i32 = arith.constant 0 : i32
    %c0_i32_0 = arith.constant 0 : i32
    return %arg0, %c0_i32 : i32, i32
  }
  func.func @transform_1(%arg0: i32, %arg1: i32) -> (i32, i32) {
    %c0_i32 = arith.constant 0 : i32
    %c0_i32_0 = arith.constant 0 : i32
    return %arg1, %c0_i32 : i32, i32
  }
  func.func @transform_2(%arg0: i32, %arg1: i32) -> (i32, i32) {
    %c0_i32 = arith.constant 0 : i32
    %c0_i32_0 = arith.constant 0 : i32
    return %arg1, %c0_i32 : i32, i32
  }
  func.func @transform_3(%arg0: i32, %arg1: i32) -> (i32, i32) {
    %c0_i32 = arith.constant 0 : i32
    %c0_i32_0 = arith.constant 0 : i32
    %c0_i32_1 = arith.constant 0 : i32
    return %c0_i32, %c0_i32_0 : i32, i32
  }
  func.func @transform_4(%arg0: i32, %arg1: i32) -> (i32, i32) {
    %c0_i32 = arith.constant 0 : i32
    %c0_i32_0 = arith.constant 0 : i32
    %c0_i32_1 = arith.constant 0 : i32
    return %c0_i32, %c0_i32_0 : i32, i32
  }
  func.func @transform_5(%arg0: i32, %arg1: i32) -> (i32, i32) {
    %c0_i32 = arith.constant 0 : i32
    %c0_i32_0 = arith.constant 0 : i32
    %c0_i32_1 = arith.constant 0 : i32
    return %c0_i32, %c0_i32_0 : i32, i32
  }
  func.func @transform_6(%arg0: i32, %arg1: i32) -> (i32, i32) {
    %c0_i32 = arith.constant 0 : i32
    %c0_i32_0 = arith.constant 0 : i32
    %c0_i32_1 = arith.constant 0 : i32
    return %c0_i32, %c0_i32_0 : i32, i32
  }
  func.func @transform_7(%arg0: i32, %arg1: i32) -> (i32, i32) {
    %c0_i32 = arith.constant 0 : i32
    %c0_i32_0 = arith.constant 0 : i32
    %c0_i32_1 = arith.constant 0 : i32
    return %c0_i32, %c0_i32_0 : i32, i32
  }
  func.func @transform_8(%arg0: i32, %arg1: i32) -> (i32, i32) {
    %c0_i32 = arith.constant 0 : i32
    %c0_i32_0 = arith.constant 0 : i32
    %c0_i32_1 = arith.constant 0 : i32
    return %c0_i32, %c0_i32_0 : i32, i32
  }
  func.func @transform_9(%arg0: i32, %arg1: i32) -> (i32, i32, i32) {
    %c0_i32 = arith.constant 0 : i32
    %c0_i32_0 = arith.constant 0 : i32
    return %arg0, %arg1, %c0_i32 : i32, i32, i32
  }
}

</mosaic_0001>

<llo_original>
// kernel: d4d_posing_forward.2
$region0: #{d4d_posing_forward.2}
  #allocation0 [shape = 'u32[]', space=smem, size = 0x4, offset = 0x4, fixed_abs, tag = 'smem constant byte address 0x4 - core index']
  #allocation1 [shape = 'u32[144,128]{1,0:T(1,128)}', space=vmem, size = 0x12000, scoped, tag = 'internal scratch']
  %s0 = inlined_call_operand.vmem [shape: f32[8,9], index: 0, kind: input, shape index: {}]
  %s1 = inlined_call_operand.vmem [shape: f32[8,132], index: 1, kind: input, shape index: {}]
  %s2 = inlined_call_operand.vmem [shape: f32[8,22], index: 2, kind: input, shape index: {}]
  %s3 = inlined_call_operand.vmem [shape: f32[9,64], index: 3, kind: input, shape index: {}]
  %s4 = inlined_call_operand.vmem [shape: f32[1,64], index: 4, kind: input, shape index: {}]
  %s5 = inlined_call_operand.vmem [shape: f32[64,32], index: 5, kind: input, shape index: {}]
  %s6 = inlined_call_operand.vmem [shape: f32[1,32], index: 6, kind: input, shape index: {}]
  %s7 = inlined_call_operand.vmem [shape: f32[32,512], index: 7, kind: input, shape index: {}]
  %s8 = inlined_call_operand.vmem [shape: f32[132,512], index: 8, kind: input, shape index: {}]
  %s9 = inlined_call_operand.vmem [shape: f32[22,512], index: 9, kind: input, shape index: {}]
  %s10 = inlined_call_operand.vmem [shape: f32[1,512], index: 10, kind: input, shape index: {}]
  %s11 = inlined_call_operand.vmem [shape: f32[8,512], index: 11, kind: output, shape index: {}]
  %s12 = sld [smem:[#allocation0]]
  $region54: #{d4d_posing_forward.2} parent=0
    _
  %s14 = ssub.s32 1, %s12
  %s15 = scalar_select 0, %s14, %s12
  // Predicated region
  $region2: #{d4d_posing_forward.2} parent=0 // pred_check
    _
  $region3: #{d4d_posing_forward.2} parent=0 // pred_check_branch
    %17 = sbr.rel (0) target = $region5
  $region4: #{d4d_posing_forward.2} parent=0 // pred_region
    _
  $region5: #{d4d_posing_forward.2} parent=0 // pred_fallthru
    _
  // Predicated region
  $region6: #{d4d_posing_forward.2} parent=0 // pred_check
    _
  $region7: #{d4d_posing_forward.2} parent=0 // pred_check_branch
    %19 = sbr.rel (0) target = $region9
  $region8: #{d4d_posing_forward.2} parent=0 // pred_region
    _
  $region9: #{d4d_posing_forward.2} parent=0 // pred_fallthru
    _
  // Predicated region
  $region10: #{d4d_posing_forward.2} parent=0 // pred_check
    _
  $region11: #{d4d_posing_forward.2} parent=0 // pred_check_branch
    %21 = sbr.rel (0) target = $region13
  $region12: #{d4d_posing_forward.2} parent=0 // pred_region
    _
  $region13: #{d4d_posing_forward.2} parent=0 // pred_fallthru
    _
  // Predicated region
  $region14: #{d4d_posing_forward.2} parent=0 // pred_check
    _
  $region15: #{d4d_posing_forward.2} parent=0 // pred_check_branch
    %23 = sbr.rel (0) target = $region17
  $region16: #{d4d_posing_forward.2} parent=0 // pred_region
    _
  $region17: #{d4d_posing_forward.2} parent=0 // pred_fallthru
    _
  // Predicated region
  $region18: #{d4d_posing_forward.2} parent=0 // pred_check
    _
  $region19: #{d4d_posing_forward.2} parent=0 // pred_check_branch
    %25 = sbr.rel (0) target = $region21
  $region20: #{d4d_posing_forward.2} parent=0 // pred_region
    _
  $region21: #{d4d_posing_forward.2} parent=0 // pred_fallthru
    _
  // Predicated region
  $region22: #{d4d_posing_forward.2} parent=0 // pred_check
    _
  $region23: #{d4d_posing_forward.2} parent=0 // pred_check_branch
    %27 = sbr.rel (0) target = $region25
  $region24: #{d4d_posing_forward.2} parent=0 // pred_region
    _
  $region25: #{d4d_posing_forward.2} parent=0 // pred_fallthru
    _
  // Predicated region
  $region26: #{d4d_posing_forward.2} parent=0 // pred_check
    _
  $region27: #{d4d_posing_forward.2} parent=0 // pred_check_branch
    %29 = sbr.rel (0) target = $region29
  $region28: #{d4d_posing_forward.2} parent=0 // pred_region
    _
  $region29: #{d4d_posing_forward.2} parent=0 // pred_fallthru
    _
  // Predicated region
  $region30: #{d4d_posing_forward.2} parent=0 // pred_check
    _
  $region31: #{d4d_posing_forward.2} parent=0 // pred_check_branch
    %31 = sbr.rel (0) target = $region33
  $region32: #{d4d_posing_forward.2} parent=0 // pred_region
    _
  $region33: #{d4d_posing_forward.2} parent=0 // pred_fallthru
    _
  // Predicated region
  $region34: #{d4d_posing_forward.2} parent=0 // pred_check
    _
  $region35: #{d4d_posing_forward.2} parent=0 // pred_check_branch
    %33 = sbr.rel (0) target = $region37
  $region36: #{d4d_posing_forward.2} parent=0 // pred_region
    _
  $region37: #{d4d_posing_forward.2} parent=0 // pred_fallthru
    _
  // Predicated region
  $region38: #{d4d_posing_forward.2} parent=0 // pred_check
    _
  $region39: #{d4d_posing_forward.2} parent=0 // pred_check_branch
    %35 = sbr.rel (0) target = $region41
  $region40: #{d4d_posing_forward.2} parent=0 // pred_region
    _
  $region41: #{d4d_posing_forward.2} parent=0 // pred_fallthru
    _
  // Predicated region
  $region42: #{d4d_posing_forward.2} parent=0 // pred_check
    _
  $region43: #{d4d_posing_forward.2} parent=0 // pred_check_branch
    %37 = sbr.rel (0) target = $region45
  $region44: #{d4d_posing_forward.2} parent=0 // pred_region
    _
  $region45: #{d4d_posing_forward.2} parent=0 // pred_fallthru
    _
  %v38 = vld [vmem:[%s0] sm:$0xff]
  %v39 = vld [vmem:[%s3] sm:$0xff]
  %v40 = vld [vmem:[%s3 + $0x8] sm:$0x1]
  %v41 = vld [vmem:[%s4] sm:$0x1]
  %v43 = vlaneseq
  %v44 = vshrl.u32 %v43, 7
  %v45 = vsub.s32 0, %v44
  %v46 = vrot.slane %v41, %v45
  %vm48 = vcmask 72704
  %v50 = vsel %vm48, %v38, 0
  %vm52 = vcmask 1040384
  %v54 = vsel %vm52, %v40, 0
  %56 = vmatprep.subr.mxu0 0.0
  %57 = vmatpush1.msra.mxu0 %v39
  %58 = vmatprep.subr.mxu0 0.0
  %59 = vmatpush1.msra.mxu0 %v54
  %60 = vmatprep.subr.mxu0 0.0
  %61 = vmatpush1.msra.mxu0 0.0
  %62 = vmatprep.subr.mxu0 0.0
  %63 = vmatpush1.msra.mxu0 0.0
  %64 = vmatprep.subr.mxu0 0.0
  %65 = vmatpush1.msra.mxu0 0.0
  %66 = vmatprep.subr.mxu0 0.0
  %67 = vmatpush1.msra.mxu0 0.0
  %68 = vmatprep.subr.mxu0 0.0
  %69 = vmatpush1.msra.mxu0 0.0
  %70 = vmatprep.subr.mxu0 0.0
  %71 = vmatpush1.msra.mxu0 0.0
  %72 = vmatprep.subr.mxu0 0.0
  %73 = vmatpush1.msra.mxu0 0.0
  %74 = vmatprep.subr.mxu0 0.0
  %75 = vmatpush1.msra.mxu0 0.0
  %76 = vmatprep.subr.mxu0 0.0
  %77 = vmatpush1.msra.mxu0 0.0
  %78 = vmatprep.subr.mxu0 0.0
  %79 = vmatpush1.msra.mxu0 0.0
  %80 = vmatprep.subr.mxu0 0.0
  %81 = vmatpush1.msra.mxu0 0.0
  %82 = vmatprep.subr.mxu0 0.0
  %83 = vmatpush1.msra.mxu0 0.0
  %84 = vmatprep.subr.mxu0 0.0
  %85 = vmatpush1.msra.mxu0 0.0
  %86 = vmatprep.subr.mxu0 0.0
  %87 = vmatpush1.msra.mxu0 0.0
  %88 = vmatprep.subr.mxu0 0.0
  %89 = vmatpush1.msra.mxu0 0.0
  %90 = vmatprep.subr.mxu0 0.0
  %91 = vmatpush1.msra.mxu0 0.0
  %92 = vmatprep.subr.mxu0 0.0
  %93 = vmatpush1.msra.mxu0 0.0
  %94 = vmatprep.subr.mxu0 0.0
  %95 = vmatpush1.msra.mxu0 0.0
  %96 = vmatprep.subr.mxu0 0.0
  %97 = vmatpush1.msra.mxu0 0.0
  %98 = vmatprep.subr.mxu0 0.0
  %99 = vmatpush1.msra.mxu0 0.0
  %100 = vmatprep.subr.mxu0 0.0
  %101 = vmatpush1.msra.mxu0 0.0
  %102 = vmatprep.subr.mxu0 0.0
  %103 = vmatpush1.msra.mxu0 0.0
  %104 = vmatprep.subr.mxu0 0.0
  %105 = vmatpush1.msra.mxu0 0.0
  %106 = vmatprep.subr.mxu0 0.0
  %107 = vmatpush1.msra.mxu0 0.0
  %108 = vmatprep.subr.mxu0 0.0
  %109 = vmatpush1.msra.mxu0 0.0
  %110 = vmatprep.subr.mxu0 0.0
  %111 = vmatpush1.msra.mxu0 0.0
  %112 = vmatprep.subr.mxu0 0.0
  %113 = vmatpush1.msra.mxu0 0.0
  %114 = vmatprep.subr.mxu0 0.0
  %115 = vmatpush1.msra.mxu0 0.0
  %116 = vmatprep.subr.mxu0 0.0
  %117 = vmatpush1.msra.mxu0 0.0
  %118 = vmatprep.subr.mxu0 0.0
  %119 = vmatpush1.msra.mxu0 0.0
  %120 = vmatprep.mubr.f32.mxu0 0.0
  %121 = vmatmul.mubr.f32.gmra.mrb[0].mxu0 %v50
  %v122 = vpop.f32.mrb[0].mxu0
  %v123 = vadd.f32 %v46, %v122
  %v124 = vpop.f32.mrb[0].mxu0
  %125 = vdwg.mxu0
  %v126 = vmax.f32 %v123, 0.0
  %v127 = vld [vmem:[%s5] sm:$0xff]
  %v128 = vld [vmem:[%s5 + $0x8] sm:$0xff]
  %v129 = vld [vmem:[%s5 + $0x10] sm:$0xff]
  %v130 = vld [vmem:[%s5 + $0x18] sm:$0xff]
  %v131 = vld [vmem:[%s5 + $0x20] sm:$0xff]
  %v132 = vld [vmem:[%s5 + $0x28] sm:$0xff]
  %v133 = vld [vmem:[%s5 + $0x30] sm:$0xff]
  %v134 = vld [vmem:[%s5 + $0x38] sm:$0xff]
  %v135 = vld [vmem:[%s6] sm:$0x1]
  %v137 = vlaneseq
  %v138 = vshrl.u32 %v137, 7
  %v139 = vsub.s32 0, %v138
  %v140 = vrot.slane %v135, %v139
  %vm142 = vcmask 523264
  %v144 = vsel %vm142, %v126, 0
  %146 = vmatprep.subr.mxu0 0.0
  %147 = vmatpush1.msra.mxu0 %v127
  %148 = vmatprep.subr.mxu0 0.0
  %149 = vmatpush1.msra.mxu0 %v128
  %150 = vmatprep.subr.mxu0 0.0
  %151 = vmatpush1.msra.mxu0 %v129
  %152 = vmatprep.subr.mxu0 0.0
  %153 = vmatpush1.msra.mxu0 %v130
  %154 = vmatprep.subr.mxu0 0.0
  %155 = vmatpush1.msra.mxu0 %v131
  %156 = vmatprep.subr.mxu0 0.0
  %157 = vmatpush1.msra.mxu0 %v132
  %158 = vmatprep.subr.mxu0 0.0
  %159 = vmatpush1.msra.mxu0 %v133
  %160 = vmatprep.subr.mxu0 0.0
  %161 = vmatpush1.msra.mxu0 %v134
  %162 = vmatprep.subr.mxu0 0.0
  %163 = vmatpush1.msra.mxu0 0.0
  %164 = vmatprep.subr.mxu0 0.0
  %165 = vmatpush1.msra.mxu0 0.0
  %166 = vmatprep.subr.mxu0 0.0
  %167 = vmatpush1.msra.mxu0 0.0
  %168 = vmatprep.subr.mxu0 0.0
  %169 = vmatpush1.msra.mxu0 0.0
  %170 = vmatprep.subr.mxu0 0.0
  %171 = vmatpush1.msra.mxu0 0.0
  %172 = vmatprep.subr.mxu0 0.0
  %173 = vmatpush1.msra.mxu0 0.0
  %174 = vmatprep.subr.mxu0 0.0
  %175 = vmatpush1.msra.mxu0 0.0
  %176 = vmatprep.subr.mxu0 0.0
  %177 = vmatpush1.msra.mxu0 0.0
  %178 = vmatprep.subr.mxu0 0.0
  %179 = vmatpush1.msra.mxu0 0.0
  %180 = vmatprep.subr.mxu0 0.0
  %181 = vmatpush1.msra.mxu0 0.0
  %182 = vmatprep.subr.mxu0 0.0
  %183 = vmatpush1.msra.mxu0 0.0
  %184 = vmatprep.subr.mxu0 0.0
  %185 = vmatpush1.msra.mxu0 0.0
  %186 = vmatprep.subr.mxu0 0.0
  %187 = vmatpush1.msra.mxu0 0.0
  %188 = vmatprep.subr.mxu0 0.0
  %189 = vmatpush1.msra.mxu0 0.0
  %190 = vmatprep.subr.mxu0 0.0
  %191 = vmatpush1.msra.mxu0 0.0
  %192 = vmatprep.subr.mxu0 0.0
  %193 = vmatpush1.msra.mxu0 0.0
  %194 = vmatprep.subr.mxu0 0.0
  %195 = vmatpush1.msra.mxu0 0.0
  %196 = vmatprep.subr.mxu0 0.0
  %197 = vmatpush1.msra.mxu0 0.0
  %198 = vmatprep.subr.mxu0 0.0
  %199 = vmatpush1.msra.mxu0 0.0
  %200 = vmatprep.subr.mxu0 0.0
  %201 = vmatpush1.msra.mxu0 0.0
  %202 = vmatprep.subr.mxu0 0.0
  %203 = vmatpush1.msra.mxu0 0.0
  %204 = vmatprep.subr.mxu0 0.0
  %205 = vmatpush1.msra.mxu0 0.0
  %206 = vmatprep.subr.mxu0 0.0
  %207 = vmatpush1.msra.mxu0 0.0
  %208 = vmatprep.subr.mxu0 0.0
  %209 = vmatpush1.msra.mxu0 0.0
  %210 = vmatprep.mubr.f32.mxu0 0.0
  %211 = vmatmul.mubr.f32.gmra.mrb[0].mxu0 %v144
  %v212 = vpop.f32.mrb[0].mxu0
  %v213 = vadd.f32 %v140, %v212
  %v214 = vpop.f32.mrb[0].mxu0
  %215 = vdwg.mxu0
  %v216 = vld [vmem:[%s7] sm:$0xff]
  %v217 = vld [vmem:[%s7 + $0x8] sm:$0xff]
  %v218 = vld [vmem:[%s7 + $0x10] sm:$0xff]
  %v219 = vld [vmem:[%s7 + $0x18] sm:$0xff]
  %v220 = vld [vmem:[%s7 + $0x20] sm:$0xff]
  %v221 = vld [vmem:[%s7 + $0x28] sm:$0xff]
  %v222 = vld [vmem:[%s7 + $0x30] sm:$0xff]
  %v223 = vld [vmem:[%s7 + $0x38] sm:$0xff]
  %v224 = vld [vmem:[%s7 + $0x40] sm:$0xff]
  %v225 = vld [vmem:[%s7 + $0x48] sm:$0xff]
  %v226 = vld [vmem:[%s7 + $0x50] sm:$0xff]
  %v227 = vld [vmem:[%s7 + $0x58] sm:$0xff]
  %v228 = vld [vmem:[%s7 + $0x60] sm:$0xff]
  %v229 = vld [vmem:[%s7 + $0x68] sm:$0xff]
  %v230 = vld [vmem:[%s7 + $0x70] sm:$0xff]
  %v231 = vld [vmem:[%s7 + $0x78] sm:$0xff]
  %v232 = vld [vmem:[%s1] sm:$0xff]
  %v233 = vld [vmem:[%s1 + $0x8] sm:$0xff]
  %v234 = vld [vmem:[%s8] sm:$0xff]
  %v235 = vld [vmem:[%s8 + $0x8] sm:$0xff]
  %v236 = vld [vmem:[%s8 + $0x10] sm:$0xff]
  %v237 = vld [vmem:[%s8 + $0x18] sm:$0xff]
  %v238 = vld [vmem:[%s8 + $0x20] sm:$0xff]
  %v239 = vld [vmem:[%s8 + $0x28] sm:$0xff]
  %v240 = vld [vmem:[%s8 + $0x30] sm:$0xff]
  %v241 = vld [vmem:[%s8 + $0x38] sm:$0xff]
  %v242 = vld [vmem:[%s8 + $0x40] sm:$0xff]
  %v243 = vld [vmem:[%s8 + $0x48] sm:$0xff]
  %v244 = vld [vmem:[%s8 + $0x50] sm:$0xff]
  %v245 = vld [vmem:[%s8 + $0x58] sm:$0xff]
  %v246 = vld [vmem:[%s8 + $0x60] sm:$0xff]
  %v247 = vld [vmem:[%s8 + $0x68] sm:$0xff]
  %v248 = vld [vmem:[%s8 + $0x70] sm:$0xff]
  %v249 = vld [vmem:[%s8 + $0x78] sm:$0xff]
  %v250 = vld [vmem:[%s8 + $0x80] sm:$0xff]
  %v251 = vld [vmem:[%s8 + $0x88] sm:$0xff]
  %v252 = vld [vmem:[%s8 + $0x90] sm:$0xff]
  %v253 = vld [vmem:[%s8 + $0x98] sm:$0xff]
  %v254 = vld [vmem:[%s8 + $0xa0] sm:$0xff]
  %v255 = vld [vmem:[%s8 + $0xa8] sm:$0xff]
  %v256 = vld [vmem:[%s8 + $0xb0] sm:$0xff]
  %v257 = vld [vmem:[%s8 + $0xb8] sm:$0xff]
  %v258 = vld [vmem:[%s8 + $0xc0] sm:$0xff]
  %v259 = vld [vmem:[%s8 + $0xc8] sm:$0xff]
  %v260 = vld [vmem:[%s8 + $0xd0] sm:$0xff]
  %v261 = vld [vmem:[%s8 + $0xd8] sm:$0xff]
  %v262 = vld [vmem:[%s8 + $0xe0] sm:$0xff]
  %v263 = vld [vmem:[%s8 + $0xe8] sm:$0xff]
  %v264 = vld [vmem:[%s8 + $0xf0] sm:$0xff]
  %v265 = vld [vmem:[%s8 + $0xf8] sm:$0xff]
  %v266 = vld [vmem:[%s8 + $0x100] sm:$0xff]
  %v267 = vld [vmem:[%s8 + $0x108] sm:$0xff]
  %v268 = vld [vmem:[%s8 + $0x110] sm:$0xff]
  %v269 = vld [vmem:[%s8 + $0x118] sm:$0xff]
  %v270 = vld [vmem:[%s8 + $0x120] sm:$0xff]
  %v271 = vld [vmem:[%s8 + $0x128] sm:$0xff]
  %v272 = vld [vmem:[%s8 + $0x130] sm:$0xff]
  %v273 = vld [vmem:[%s8 + $0x138] sm:$0xff]
  %v274 = vld [vmem:[%s8 + $0x140] sm:$0xff]
  %v275 = vld [vmem:[%s8 + $0x148] sm:$0xff]
  %v276 = vld [vmem:[%s8 + $0x150] sm:$0xff]
  %v277 = vld [vmem:[%s8 + $0x158] sm:$0xff]
  %v278 = vld [vmem:[%s8 + $0x160] sm:$0xff]
  %v279 = vld [vmem:[%s8 + $0x168] sm:$0xff]
  %v280 = vld [vmem:[%s8 + $0x170] sm:$0xff]
  %v281 = vld [vmem:[%s8 + $0x178] sm:$0xff]
  %v282 = vld [vmem:[%s8 + $0x180] sm:$0xff]
  %v283 = vld [vmem:[%s8 + $0x188] sm:$0xff]
  %v284 = vld [vmem:[%s8 + $0x190] sm:$0xff]
  %v285 = vld [vmem:[%s8 + $0x198] sm:$0xff]
  %v286 = vld [vmem:[%s8 + $0x1a0] sm:$0xff]
  %v287 = vld [vmem:[%s8 + $0x1a8] sm:$0xff]
  %v288 = vld [vmem:[%s8 + $0x1b0] sm:$0xff]
  %v289 = vld [vmem:[%s8 + $0x1b8] sm:$0xff]
  %v290 = vld [vmem:[%s8 + $0x1c0] sm:$0xff]
  %v291 = vld [vmem:[%s8 + $0x1c8] sm:$0xff]
  %v292 = vld [vmem:[%s8 + $0x1d0] sm:$0xff]
  %v293 = vld [vmem:[%s8 + $0x1d8] sm:$0xff]
  %v294 = vld [vmem:[%s8 + $0x1e0] sm:$0xff]
  %v295 = vld [vmem:[%s8 + $0x1e8] sm:$0xff]
  %v296 = vld [vmem:[%s8 + $0x1f0] sm:$0xff]
  %v297 = vld [vmem:[%s8 + $0x1f8] sm:$0xff]
  %v298 = vld [vmem:[%s8 + $0x200] sm:$0xf]
  %v299 = vld [vmem:[%s8 + $0x208] sm:$0xf]
  %v300 = vld [vmem:[%s8 + $0x210] sm:$0xf]
  %v301 = vld [vmem:[%s8 + $0x218] sm:$0xf]
  %vm302 = vcmask 31744
  %v304 = vsel %vm302, %v233, 0
  %vm306 = vcmask 1043456
  %v308 = vsel %vm306, %v298, 0
  %v311 = vsel %vm306, %v299, 0
  %v314 = vsel %vm306, %v300, 0
  %v317 = vsel %vm306, %v301, 0
  %319 = vmatprep.subr.mxu0 %v235
  %320 = vmatpush1.msra.mxu0 %v234
  %321 = vmatprep.subr.mxu0 %v239
  %322 = vmatpush1.msra.mxu0 %v238
  %323 = vmatprep.subr.mxu0 %v243
  %324 = vmatpush1.msra.mxu0 %v242
  %325 = vmatprep.subr.mxu0 %v247
  %326 = vmatpush1.msra.mxu0 %v246
  %327 = vmatprep.subr.mxu0 %v251
  %328 = vmatpush1.msra.mxu0 %v250
  %329 = vmatprep.subr.mxu0 %v255
  %330 = vmatpush1.msra.mxu0 %v254
  %331 = vmatprep.subr.mxu0 %v259
  %332 = vmatpush1.msra.mxu0 %v258
  %333 = vmatprep.subr.mxu0 %v263
  %334 = vmatpush1.msra.mxu0 %v262
  %335 = vmatprep.subr.mxu0 %v267
  %336 = vmatpush1.msra.mxu0 %v266
  %337 = vmatprep.subr.mxu0 %v271
  %338 = vmatpush1.msra.mxu0 %v270
  %339 = vmatprep.subr.mxu0 %v275
  %340 = vmatpush1.msra.mxu0 %v274
  %341 = vmatprep.subr.mxu0 %v279
  %342 = vmatpush1.msra.mxu0 %v278
  %343 = vmatprep.subr.mxu0 %v283
  %344 = vmatpush1.msra.mxu0 %v282
  %345 = vmatprep.subr.mxu0 %v287
  %346 = vmatpush1.msra.mxu0 %v286
  %347 = vmatprep.subr.mxu0 %v291
  %348 = vmatpush1.msra.mxu0 %v290
  %349 = vmatprep.subr.mxu0 %v295
  %350 = vmatpush1.msra.mxu0 %v294
  %351 = vmatprep.subr.mxu0 %v311
  %352 = vmatpush1.msra.mxu0 %v308
  %353 = vmatprep.subr.mxu0 0.0
  %354 = vmatpush1.msra.mxu0 0.0
  %355 = vmatprep.subr.mxu0 0.0
  %356 = vmatpush1.msra.mxu0 0.0
  %357 = vmatprep.subr.mxu0 0.0
  %358 = vmatpush1.msra.mxu0 0.0
  %359 = vmatprep.subr.mxu0 0.0
  %360 = vmatpush1.msra.mxu0 0.0
  %361 = vmatprep.subr.mxu0 0.0
  %362 = vmatpush1.msra.mxu0 0.0
  %363 = vmatprep.subr.mxu0 0.0
  %364 = vmatpush1.msra.mxu0 0.0
  %365 = vmatprep.subr.mxu0 0.0
  %366 = vmatpush1.msra.mxu0 0.0
  %367 = vmatprep.subr.mxu0 0.0
  %368 = vmatpush1.msra.mxu0 0.0
  %369 = vmatprep.subr.mxu0 0.0
  %370 = vmatpush1.msra.mxu0 0.0
  %371 = vmatprep.subr.mxu0 0.0
  %372 = vmatpush1.msra.mxu0 0.0
  %373 = vmatprep.subr.mxu0 0.0
  %374 = vmatpush1.msra.mxu0 0.0
  %375 = vmatprep.subr.mxu0 0.0
  %376 = vmatpush1.msra.mxu0 0.0
  %377 = vmatprep.subr.mxu0 0.0
  %378 = vmatpush1.msra.mxu0 0.0
  %379 = vmatprep.subr.mxu0 0.0
  %380 = vmatpush1.msra.mxu0 0.0
  %381 = vmatprep.subr.mxu0 0.0
  %382 = vmatpush1.msra.mxu0 0.0
  %383 = vmatprep.mubr.f32.mxu0 %v304
  %384 = vmatmul.mubr.f32.gmra.mrb[0].mxu0 %v232
  %v385 = vpop.f32.mrb[0].mxu0
  %v386 = vadd.f32 0.0, %v385
  %v387 = vpop.f32.mrb[0].mxu0
  %v388 = vadd.f32 0.0, %v387
  %389 = vdwg.mxu0
  %390 = vmatprep.subr.mxu0 %v237
  %391 = vmatpush1.msra.mxu0 %v236
  %392 = vmatprep.subr.mxu0 %v241
  %393 = vmatpush1.msra.mxu0 %v240
  %394 = vmatprep.subr.mxu0 %v245
  %395 = vmatpush1.msra.mxu0 %v244
  %396 = vmatprep.subr.mxu0 %v249
  %397 = vmatpush1.msra.mxu0 %v248
  %398 = vmatprep.subr.mxu0 %v253
  %399 = vmatpush1.msra.mxu0 %v252
  %400 = vmatprep.subr.mxu0 %v257
  %401 = vmatpush1.msra.mxu0 %v256
  %402 = vmatprep.subr.mxu0 %v261
  %403 = vmatpush1.msra.mxu0 %v260
  %404 = vmatprep.subr.mxu0 %v265
  %405 = vmatpush1.msra.mxu0 %v264
  %406 = vmatprep.subr.mxu0 %v269
  %407 = vmatpush1.msra.mxu0 %v268
  %408 = vmatprep.subr.mxu0 %v273
  %409 = vmatpush1.msra.mxu0 %v272
  %410 = vmatprep.subr.mxu0 %v277
  %411 = vmatpush1.msra.mxu0 %v276
  %412 = vmatprep.subr.mxu0 %v281
  %413 = vmatpush1.msra.mxu0 %v280
  %414 = vmatprep.subr.mxu0 %v285
  %415 = vmatpush1.msra.mxu0 %v284
  %416 = vmatprep.subr.mxu0 %v289
  %417 = vmatpush1.msra.mxu0 %v288
  %418 = vmatprep.subr.mxu0 %v293
  %419 = vmatpush1.msra.mxu0 %v292
  %420 = vmatprep.subr.mxu0 %v297
  %421 = vmatpush1.msra.mxu0 %v296
  %422 = vmatprep.subr.mxu0 %v317
  %423 = vmatpush1.msra.mxu0 %v314
  %424 = vmatprep.subr.mxu0 0.0
  %425 = vmatpush1.msra.mxu0 0.0
  %426 = vmatprep.subr.mxu0 0.0
  %427 = vmatpush1.msra.mxu0 0.0
  %428 = vmatprep.subr.mxu0 0.0
  %429 = vmatpush1.msra.mxu0 0.0
  %430 = vmatprep.subr.mxu0 0.0
  %431 = vmatpush1.msra.mxu0 0.0
  %432 = vmatprep.subr.mxu0 0.0
  %433 = vmatpush1.msra.mxu0 0.0
  %434 = vmatprep.subr.mxu0 0.0
  %435 = vmatpush1.msra.mxu0 0.0
  %436 = vmatprep.subr.mxu0 0.0
  %437 = vmatpush1.msra.mxu0 0.0
  %438 = vmatprep.subr.mxu0 0.0
  %439 = vmatpush1.msra.mxu0 0.0
  %440 = vmatprep.subr.mxu0 0.0
  %441 = vmatpush1.msra.mxu0 0.0
  %442 = vmatprep.subr.mxu0 0.0
  %443 = vmatpush1.msra.mxu0 0.0
  %444 = vmatprep.subr.mxu0 0.0
  %445 = vmatpush1.msra.mxu0 0.0
  %446 = vmatprep.subr.mxu0 0.0
  %447 = vmatpush1.msra.mxu0 0.0
  %448 = vmatprep.subr.mxu0 0.0
  %449 = vmatpush1.msra.mxu0 0.0
  %450 = vmatprep.subr.mxu0 0.0
  %451 = vmatpush1.msra.mxu0 0.0
  %452 = vmatprep.subr.mxu0 0.0
  %453 = vmatpush1.msra.mxu0 0.0
  %454 = vmatprep.mubr.f32.mxu0 %v304
  %455 = vmatmul.mubr.f32.gmra.mrb[0].mxu0 %v232
  %v456 = vpop.f32.mrb[0].mxu0
  %v457 = vadd.f32 0.0, %v456
  %v458 = vpop.f32.mrb[0].mxu0
  %v459 = vadd.f32 0.0, %v458
  %460 = vdwg.mxu0
  %vm461 = vcmask 261120
  %v463 = vsel %vm461, %v213, 0
  %465 = vmatprep.subr.mxu0 %v217
  %466 = vmatpush1.msra.mxu0 %v216
  %467 = vmatprep.subr.mxu0 %v221
  %468 = vmatpush1.msra.mxu0 %v220
  %469 = vmatprep.subr.mxu0 %v225
  %470 = vmatpush1.msra.mxu0 %v224
  %471 = vmatprep.subr.mxu0 %v229
  %472 = vmatpush1.msra.mxu0 %v228
  %473 = vmatprep.subr.mxu0 0.0
  %474 = vmatpush1.msra.mxu0 0.0
  %475 = vmatprep.subr.mxu0 0.0
  %476 = vmatpush1.msra.mxu0 0.0
  %477 = vmatprep.subr.mxu0 0.0
  %478 = vmatpush1.msra.mxu0 0.0
  %479 = vmatprep.subr.mxu0 0.0
  %480 = vmatpush1.msra.mxu0 0.0
  %481 = vmatprep.subr.mxu0 0.0
  %482 = vmatpush1.msra.mxu0 0.0
  %483 = vmatprep.subr.mxu0 0.0
  %484 = vmatpush1.msra.mxu0 0.0
  %485 = vmatprep.subr.mxu0 0.0
  %486 = vmatpush1.msra.mxu0 0.0
  %487 = vmatprep.subr.mxu0 0.0
  %488 = vmatpush1.msra.mxu0 0.0
  %489 = vmatprep.subr.mxu0 0.0
  %490 = vmatpush1.msra.mxu0 0.0
  %491 = vmatprep.subr.mxu0 0.0
  %492 = vmatpush1.msra.mxu0 0.0
  %493 = vmatprep.subr.mxu0 0.0
  %494 = vmatpush1.msra.mxu0 0.0
  %495 = vmatprep.subr.mxu0 0.0
  %496 = vmatpush1.msra.mxu0 0.0
  %497 = vmatprep.subr.mxu0 0.0
  %498 = vmatpush1.msra.mxu0 0.0
  %499 = vmatprep.subr.mxu0 0.0
  %500 = vmatpush1.msra.mxu0 0.0
  %501 = vmatprep.subr.mxu0 0.0
  %502 = vmatpush1.msra.mxu0 0.0
  %503 = vmatprep.subr.mxu0 0.0
  %504 = vmatpush1.msra.mxu0 0.0
  %505 = vmatprep.subr.mxu0 0.0
  %506 = vmatpush1.msra.mxu0 0.0
  %507 = vmatprep.subr.mxu0 0.0
  %508 = vmatpush1.msra.mxu0 0.0
  %509 = vmatprep.subr.mxu0 0.0
  %510 = vmatpush1.msra.mxu0 0.0
  %511 = vmatprep.subr.mxu0 0.0
  %512 = vmatpush1.msra.mxu0 0.0
  %513 = vmatprep.subr.mxu0 0.0
  %514 = vmatpush1.msra.mxu0 0.0
  %515 = vmatprep.subr.mxu0 0.0
  %516 = vmatpush1.msra.mxu0 0.0
  %517 = vmatprep.subr.mxu0 0.0
  %518 = vmatpush1.msra.mxu0 0.0
  %519 = vmatprep.subr.mxu0 0.0
  %520 = vmatpush1.msra.mxu0 0.0
  %521 = vmatprep.subr.mxu0 0.0
  %522 = vmatpush1.msra.mxu0 0.0
  %523 = vmatprep.subr.mxu0 0.0
  %524 = vmatpush1.msra.mxu0 0.0
  %525 = vmatprep.subr.mxu0 0.0
  %526 = vmatpush1.msra.mxu0 0.0
  %527 = vmatprep.subr.mxu0 0.0
  %528 = vmatpush1.msra.mxu0 0.0
  %529 = vmatprep.mubr.f32.mxu0 0.0
  %530 = vmatmul.mubr.f32.gmra.mrb[0].mxu0 %v463
  %v531 = vpop.f32.mrb[0].mxu0
  %v532 = vadd.f32 %v386, %v531
  %v533 = vpop.f32.mrb[0].mxu0
  %v534 = vadd.f32 %v388, %v533
  %535 = vdwg.mxu0
  %536 = vmatprep.subr.mxu0 %v219
  %537 = vmatpush1.msra.mxu0 %v218
  %538 = vmatprep.subr.mxu0 %v223
  %539 = vmatpush1.msra.mxu0 %v222
  %540 = vmatprep.subr.mxu0 %v227
  %541 = vmatpush1.msra.mxu0 %v226
  %542 = vmatprep.subr.mxu0 %v231
  %543 = vmatpush1.msra.mxu0 %v230
  %544 = vmatprep.subr.mxu0 0.0
  %545 = vmatpush1.msra.mxu0 0.0
  %546 = vmatprep.subr.mxu0 0.0
  %547 = vmatpush1.msra.mxu0 0.0
  %548 = vmatprep.subr.mxu0 0.0
  %549 = vmatpush1.msra.mxu0 0.0
  %550 = vmatprep.subr.mxu0 0.0
  %551 = vmatpush1.msra.mxu0 0.0
  %552 = vmatprep.subr.mxu0 0.0
  %553 = vmatpush1.msra.mxu0 0.0
  %554 = vmatprep.subr.mxu0 0.0
  %555 = vmatpush1.msra.mxu0 0.0
  %556 = vmatprep.subr.mxu0 0.0
  %557 = vmatpush1.msra.mxu0 0.0
  %558 = vmatprep.subr.mxu0 0.0
  %559 = vmatpush1.msra.mxu0 0.0
  %560 = vmatprep.subr.mxu0 0.0
  %561 = vmatpush1.msra.mxu0 0.0
  %562 = vmatprep.subr.mxu0 0.0
  %563 = vmatpush1.msra.mxu0 0.0
  %564 = vmatprep.subr.mxu0 0.0
  %565 = vmatpush1.msra.mxu0 0.0
  %566 = vmatprep.subr.mxu0 0.0
  %567 = vmatpush1.msra.mxu0 0.0
  %568 = vmatprep.subr.mxu0 0.0
  %569 = vmatpush1.msra.mxu0 0.0
  %570 = vmatprep.subr.mxu0 0.0
  %571 = vmatpush1.msra.mxu0 0.0
  %572 = vmatprep.subr.mxu0 0.0
  %573 = vmatpush1.msra.mxu0 0.0
  %574 = vmatprep.subr.mxu0 0.0
  %575 = vmatpush1.msra.mxu0 0.0
  %576 = vmatprep.subr.mxu0 0.0
  %577 = vmatpush1.msra.mxu0 0.0
  %578 = vmatprep.subr.mxu0 0.0
  %579 = vmatpush1.msra.mxu0 0.0
  %580 = vmatprep.subr.mxu0 0.0
  %581 = vmatpush1.msra.mxu0 0.0
  %582 = vmatprep.subr.mxu0 0.0
  %583 = vmatpush1.msra.mxu0 0.0
  %584 = vmatprep.subr.mxu0 0.0
  %585 = vmatpush1.msra.mxu0 0.0
  %586 = vmatprep.subr.mxu0 0.0
  %587 = vmatpush1.msra.mxu0 0.0
  %588 = vmatprep.subr.mxu0 0.0
  %589 = vmatpush1.msra.mxu0 0.0
  %590 = vmatprep.subr.mxu0 0.0
  %591 = vmatpush1.msra.mxu0 0.0
  %592 = vmatprep.subr.mxu0 0.0
  %593 = vmatpush1.msra.mxu0 0.0
  %594 = vmatprep.subr.mxu0 0.0
  %595 = vmatpush1.msra.mxu0 0.0
  %596 = vmatprep.subr.mxu0 0.0
  %597 = vmatpush1.msra.mxu0 0.0
  %598 = vmatprep.subr.mxu0 0.0
  %599 = vmatpush1.msra.mxu0 0.0
  %600 = vmatprep.mubr.f32.mxu0 0.0
  %601 = vmatmul.mubr.f32.gmra.mrb[0].mxu0 %v463
  %v602 = vpop.f32.mrb[0].mxu0
  %v603 = vadd.f32 %v457, %v602
  %v604 = vpop.f32.mrb[0].mxu0
  %v605 = vadd.f32 %v459, %v604
  %606 = vdwg.mxu0
  %v607 = vld [vmem:[%s2] sm:$0xff]
  %v608 = vld [vmem:[%s9] sm:$0xff]
  %v609 = vld [vmem:[%s9 + $0x8] sm:$0xff]
  %v610 = vld [vmem:[%s9 + $0x10] sm:$0xff]
  %v611 = vld [vmem:[%s9 + $0x18] sm:$0xff]
  %v612 = vld [vmem:[%s9 + $0x20] sm:$0xff]
  %v613 = vld [vmem:[%s9 + $0x28] sm:$0xff]
  %v614 = vld [vmem:[%s9 + $0x30] sm:$0xff]
  %v615 = vld [vmem:[%s9 + $0x38] sm:$0xff]
  %v616 = vld [vmem:[%s9 + $0x40] sm:$0x3f]
  %v617 = vld [vmem:[%s9 + $0x48] sm:$0x3f]
  %v618 = vld [vmem:[%s9 + $0x50] sm:$0x3f]
  %v619 = vld [vmem:[%s9 + $0x58] sm:$0x3f]
  %vm620 = vcmask 179200
  %v622 = vsel %vm620, %v607, 0
  %vm624 = vcmask 1045504
  %v626 = vsel %vm624, %v616, 0
  %v629 = vsel %vm624, %v617, 0
  %v632 = vsel %vm624, %v618, 0
  %v635 = vsel %vm624, %v619, 0
  %637 = vmatprep.subr.mxu0 %v609
  %638 = vmatpush1.msra.mxu0 %v608
  %639 = vmatprep.subr.mxu0 %v613
  %640 = vmatpush1.msra.mxu0 %v612
  %641 = vmatprep.subr.mxu0 %v629
  %642 = vmatpush1.msra.mxu0 %v626
  %643 = vmatprep.subr.mxu0 0.0
  %644 = vmatpush1.msra.mxu0 0.0
  %645 = vmatprep.subr.mxu0 0.0
  %646 = vmatpush1.msra.mxu0 0.0
  %647 = vmatprep.subr.mxu0 0.0
  %648 = vmatpush1.msra.mxu0 0.0
  %649 = vmatprep.subr.mxu0 0.0
  %650 = vmatpush1.msra.mxu0 0.0
  %651 = vmatprep.subr.mxu0 0.0
  %652 = vmatpush1.msra.mxu0 0.0
  %653 = vmatprep.subr.mxu0 0.0
  %654 = vmatpush1.msra.mxu0 0.0
  %655 = vmatprep.subr.mxu0 0.0
  %656 = vmatpush1.msra.mxu0 0.0
  %657 = vmatprep.subr.mxu0 0.0
  %658 = vmatpush1.msra.mxu0 0.0
  %659 = vmatprep.subr.mxu0 0.0
  %660 = vmatpush1.msra.mxu0 0.0
  %661 = vmatprep.subr.mxu0 0.0
  %662 = vmatpush1.msra.mxu0 0.0
  %663 = vmatprep.subr.mxu0 0.0
  %664 = vmatpush1.msra.mxu0 0.0
  %665 = vmatprep.subr.mxu0 0.0
  %666 = vmatpush1.msra.mxu0 0.0
  %667 = vmatprep.subr.mxu0 0.0
  %668 = vmatpush1.msra.mxu0 0.0
  %669 = vmatprep.subr.mxu0 0.0
  %670 = vmatpush1.msra.mxu0 0.0
  %671 = vmatprep.subr.mxu0 0.0
  %672 = vmatpush1.msra.mxu0 0.0
  %673 = vmatprep.subr.mxu0 0.0
  %674 = vmatpush1.msra.mxu0 0.0
  %675 = vmatprep.subr.mxu0 0.0
  %676 = vmatpush1.msra.mxu0 0.0
  %677 = vmatprep.subr.mxu0 0.0
  %678 = vmatpush1.msra.mxu0 0.0
  %679 = vmatprep.subr.mxu0 0.0
  %680 = vmatpush1.msra.mxu0 0.0
  %681 = vmatprep.subr.mxu0 0.0
  %682 = vmatpush1.msra.mxu0 0.0
  %683 = vmatprep.subr.mxu0 0.0
  %684 = vmatpush1.msra.mxu0 0.0
  %685 = vmatprep.subr.mxu0 0.0
  %686 = vmatpush1.msra.mxu0 0.0
  %687 = vmatprep.subr.mxu0 0.0
  %688 = vmatpush1.msra.mxu0 0.0
  %689 = vmatprep.subr.mxu0 0.0
  %690 = vmatpush1.msra.mxu0 0.0
  %691 = vmatprep.subr.mxu0 0.0
  %692 = vmatpush1.msra.mxu0 0.0
  %693 = vmatprep.subr.mxu0 0.0
  %694 = vmatpush1.msra.mxu0 0.0
  %695 = vmatprep.subr.mxu0 0.0
  %696 = vmatpush1.msra.mxu0 0.0
  %697 = vmatprep.subr.mxu0 0.0
  %698 = vmatpush1.msra.mxu0 0.0
  %699 = vmatprep.subr.mxu0 0.0
  %700 = vmatpush1.msra.mxu0 0.0
  %701 = vmatprep.mubr.f32.mxu0 0.0
  %702 = vmatmul.mubr.f32.gmra.mrb[0].mxu0 %v622
  %v703 = vpop.f32.mrb[0].mxu0
  %v704 = vadd.f32 0.0, %v703
  %v705 = vpop.f32.mrb[0].mxu0
  %v706 = vadd.f32 0.0, %v705
  %707 = vdwg.mxu0
  %708 = vmatprep.subr.mxu0 %v611
  %709 = vmatpush1.msra.mxu0 %v610
  %710 = vmatprep.subr.mxu0 %v615
  %711 = vmatpush1.msra.mxu0 %v614
  %712 = vmatprep.subr.mxu0 %v635
  %713 = vmatpush1.msra.mxu0 %v632
  %714 = vmatprep.subr.mxu0 0.0
  %715 = vmatpush1.msra.mxu0 0.0
  %716 = vmatprep.subr.mxu0 0.0
  %717 = vmatpush1.msra.mxu0 0.0
  %718 = vmatprep.subr.mxu0 0.0
  %719 = vmatpush1.msra.mxu0 0.0
  %720 = vmatprep.subr.mxu0 0.0
  %721 = vmatpush1.msra.mxu0 0.0
  %722 = vmatprep.subr.mxu0 0.0
  %723 = vmatpush1.msra.mxu0 0.0
  %724 = vmatprep.subr.mxu0 0.0
  %725 = vmatpush1.msra.mxu0 0.0
  %726 = vmatprep.subr.mxu0 0.0
  %727 = vmatpush1.msra.mxu0 0.0
  %728 = vmatprep.subr.mxu0 0.0
  %729 = vmatpush1.msra.mxu0 0.0
  %730 = vmatprep.subr.mxu0 0.0
  %731 = vmatpush1.msra.mxu0 0.0
  %732 = vmatprep.subr.mxu0 0.0
  %733 = vmatpush1.msra.mxu0 0.0
  %734 = vmatprep.subr.mxu0 0.0
  %735 = vmatpush1.msra.mxu0 0.0
  %736 = vmatprep.subr.mxu0 0.0
  %737 = vmatpush1.msra.mxu0 0.0
  %738 = vmatprep.subr.mxu0 0.0
  %739 = vmatpush1.msra.mxu0 0.0
  %740 = vmatprep.subr.mxu0 0.0
  %741 = vmatpush1.msra.mxu0 0.0
  %742 = vmatprep.subr.mxu0 0.0
  %743 = vmatpush1.msra.mxu0 0.0
  %744 = vmatprep.subr.mxu0 0.0
  %745 = vmatpush1.msra.mxu0 0.0
  %746 = vmatprep.subr.mxu0 0.0
  %747 = vmatpush1.msra.mxu0 0.0
  %748 = vmatprep.subr.mxu0 0.0
  %749 = vmatpush1.msra.mxu0 0.0
  %750 = vmatprep.subr.mxu0 0.0
  %751 = vmatpush1.msra.mxu0 0.0
  %752 = vmatprep.subr.mxu0 0.0
  %753 = vmatpush1.msra.mxu0 0.0
  %754 = vmatprep.subr.mxu0 0.0
  %755 = vmatpush1.msra.mxu0 0.0
  %756 = vmatprep.subr.mxu0 0.0
  %757 = vmatpush1.msra.mxu0 0.0
  %758 = vmatprep.subr.mxu0 0.0
  %759 = vmatpush1.msra.mxu0 0.0
  %760 = vmatprep.subr.mxu0 0.0
  %761 = vmatpush1.msra.mxu0 0.0
  %762 = vmatprep.subr.mxu0 0.0
  %763 = vmatpush1.msra.mxu0 0.0
  %764 = vmatprep.subr.mxu0 0.0
  %765 = vmatpush1.msra.mxu0 0.0
  %766 = vmatprep.subr.mxu0 0.0
  %767 = vmatpush1.msra.mxu0 0.0
  %768 = vmatprep.subr.mxu0 0.0
  %769 = vmatpush1.msra.mxu0 0.0
  %770 = vmatprep.subr.mxu0 0.0
  %771 = vmatpush1.msra.mxu0 0.0
  %772 = vmatprep.mubr.f32.mxu0 0.0
  %773 = vmatmul.mubr.f32.gmra.mrb[0].mxu0 %v622
  %v774 = vpop.f32.mrb[0].mxu0
  %v775 = vadd.f32 0.0, %v774
  %v776 = vpop.f32.mrb[0].mxu0
  %v777 = vadd.f32 0.0, %v776
  %778 = vdwg.mxu0
  %v779 = vadd.f32 %v532, %v704
  %v780 = vadd.f32 %v534, %v706
  %v781 = vadd.f32 %v603, %v775
  %v782 = vadd.f32 %v605, %v777
  %v783 = vld [vmem:[%s10] sm:$0xf]
  %v785 = vlaneseq
  %v786 = vshrl.u32 %v785, 7
  %v787 = vsub.s32 0, %v786
  %v788 = vrot.slane %v783, %v787
  %v789 = vlaneseq
  %v790 = vshrl.u32 %v789, 7
  %v791 = vsub.s32 1, %v790
  %v792 = vrot.slane %v783, %v791
  %v793 = vlaneseq
  %v794 = vshrl.u32 %v793, 7
  %v795 = vsub.s32 2, %v794
  %v796 = vrot.slane %v783, %v795
  %v797 = vlaneseq
  %v798 = vshrl.u32 %v797, 7
  %v799 = vsub.s32 3, %v798
  %v800 = vrot.slane %v783, %v799
  %v805 = vadd.f32 %v779, %v788
  %v806 = vadd.f32 %v780, %v792
  %v807 = vadd.f32 %v781, %v796
  %v808 = vadd.f32 %v782, %v800
  %809 = vst [vmem:[%s11] sm:$0xff] %v805
  %810 = vst [vmem:[%s11 + $0x8] sm:$0xff] %v806
  %811 = vst [vmem:[%s11 + $0x10] sm:$0xff] %v807
  %812 = vst [vmem:[%s11 + $0x18] sm:$0xff] %v808
  // Predicated region
  $region46: #{d4d_posing_forward.2} parent=0 // pred_check
    _
  $region47: #{d4d_posing_forward.2} parent=0 // pred_check_branch
    %814 = sbr.rel (0) target = $region49
  $region48: #{d4d_posing_forward.2} parent=0 // pred_region
    _
  $region49: #{d4d_posing_forward.2} parent=0 // pred_fallthru
    _
  // Predicated region
  $region50: #{d4d_posing_forward.2} parent=0 // pred_check
    _
  $region51: #{d4d_posing_forward.2} parent=0 // pred_check_branch
    %816 = sbr.rel (0) target = $region53
  $region52: #{d4d_posing_forward.2} parent=0 // pred_region
    _
  $region53: #{d4d_posing_forward.2} parent=0 // pred_fallthru
    _

// kernel: d4d_posing_forward.3
$region0: #{d4d_posing_forward.3}
  #allocation0 [shape = 'u32[]', space=smem, size = 0x4, offset = 0x4, fixed_abs, tag = 'smem constant byte address 0x4 - core index']
  #allocation1 [shape = 'u32[144,128]{1,0:T(1,128)}', space=vmem, size = 0x12000, scoped, tag = 'internal scratch']
  %s0 = inlined_call_operand.vmem [shape: f32[8,512], index: 0, kind: input, shape index: {}]
  %s1 = inlined_call_operand.vmem [shape: f32[8,512], index: 1, kind: input, shape index: {}]
  %s2 = inlined_call_operand.vmem [shape: f32[8,9], index: 2, kind: input, shape index: {}]
  %s3 = inlined_call_operand.vmem [shape: bf16[512,256], index: 3, kind: input, shape index: {}]
  %s4 = inlined_call_operand.vmem [shape: f32[1,256], index: 4, kind: input, shape index: {}]
  %s5 = inlined_call_operand.vmem [shape: bf16[256,128], index: 5, kind: input, shape index: {}]
  %s6 = inlined_call_operand.vmem [shape: f32[1,128], index: 6, kind: input, shape index: {}]
  %s7 = inlined_call_operand.vmem [shape: bf16[128,128], index: 7, kind: input, shape index: {}]
  %s8 = inlined_call_operand.vmem [shape: f32[1,128], index: 8, kind: input, shape index: {}]
  %s9 = inlined_call_operand.vmem [shape: f32[8,8,9], index: 9, kind: output, shape index: {}]
  %s10 = sld [smem:[#allocation0]]
  $region46: #{d4d_posing_forward.3} parent=0
    _
  %s12 = ssub.s32 1, %s10
  %s13 = scalar_select 0, %s12, %s10
  // Predicated region
  $region2: #{d4d_posing_forward.3} parent=0 // pred_check
    _
  $region3: #{d4d_posing_forward.3} parent=0 // pred_check_branch
    %15 = sbr.rel (0) target = $region5
  $region4: #{d4d_posing_forward.3} parent=0 // pred_region
    _
  $region5: #{d4d_posing_forward.3} parent=0 // pred_fallthru
    _
  // Predicated region
  $region6: #{d4d_posing_forward.3} parent=0 // pred_check
    _
  $region7: #{d4d_posing_forward.3} parent=0 // pred_check_branch
    %17 = sbr.rel (0) target = $region9
  $region8: #{d4d_posing_forward.3} parent=0 // pred_region
    _
  $region9: #{d4d_posing_forward.3} parent=0 // pred_fallthru
    _
  // Predicated region
  $region10: #{d4d_posing_forward.3} parent=0 // pred_check
    _
  $region11: #{d4d_posing_forward.3} parent=0 // pred_check_branch
    %19 = sbr.rel (0) target = $region13
  $region12: #{d4d_posing_forward.3} parent=0 // pred_region
    _
  $region13: #{d4d_posing_forward.3} parent=0 // pred_fallthru
    _
  // Predicated region
  $region14: #{d4d_posing_forward.3} parent=0 // pred_check
    _
  $region15: #{d4d_posing_forward.3} parent=0 // pred_check_branch
    %21 = sbr.rel (0) target = $region17
  $region16: #{d4d_posing_forward.3} parent=0 // pred_region
    _
  $region17: #{d4d_posing_forward.3} parent=0 // pred_fallthru
    _
  // Predicated region
  $region18: #{d4d_posing_forward.3} parent=0 // pred_check
    _
  $region19: #{d4d_posing_forward.3} parent=0 // pred_check_branch
    %23 = sbr.rel (0) target = $region21
  $region20: #{d4d_posing_forward.3} parent=0 // pred_region
    _
  $region21: #{d4d_posing_forward.3} parent=0 // pred_fallthru
    _
  // Predicated region
  $region22: #{d4d_posing_forward.3} parent=0 // pred_check
    _
  $region23: #{d4d_posing_forward.3} parent=0 // pred_check_branch
    %25 = sbr.rel (0) target = $region25
  $region24: #{d4d_posing_forward.3} parent=0 // pred_region
    _
  $region25: #{d4d_posing_forward.3} parent=0 // pred_fallthru
    _
  // Predicated region
  $region26: #{d4d_posing_forward.3} parent=0 // pred_check
    _
  $region27: #{d4d_posing_forward.3} parent=0 // pred_check_branch
    %27 = sbr.rel (0) target = $region29
  $region28: #{d4d_posing_forward.3} parent=0 // pred_region
    _
  $region29: #{d4d_posing_forward.3} parent=0 // pred_fallthru
    _
  // Predicated region
  $region30: #{d4d_posing_forward.3} parent=0 // pred_check
    _
  $region31: #{d4d_posing_forward.3} parent=0 // pred_check_branch
    %29 = sbr.rel (0) target = $region33
  $region32: #{d4d_posing_forward.3} parent=0 // pred_region
    _
  $region33: #{d4d_posing_forward.3} parent=0 // pred_fallthru
    _
  // Predicated region
  $region34: #{d4d_posing_forward.3} parent=0 // pred_check
    _
  $region35: #{d4d_posing_forward.3} parent=0 // pred_check_branch
    %31 = sbr.rel (0) target = $region37
  $region36: #{d4d_posing_forward.3} parent=0 // pred_region
    _
  $region37: #{d4d_posing_forward.3} parent=0 // pred_fallthru
    _
  %v33 = vld [vmem:[%s0] sm:$0xff]
  %v34 = vld [vmem:[%s0 + $0x8] sm:$0xff]
  %v35 = vld [vmem:[%s0 + $0x10] sm:$0xff]
  %v36 = vld [vmem:[%s0 + $0x18] sm:$0xff]
  %v41 = vcombine.low %v33, %v34
  %v42 = vcombine.high %v33, %v34
  %v43 = vcombine.low %v35, %v36
  %v44 = vcombine.high %v35, %v36
  %v46 = vunpack.c.l.s4 1966171168
  %v47 = vunpack.c.0.s8 %v46
  %v48 = vlaneseq
  %v49 = vshrl.u32 %v48, 7
  %v50 = vsub.s32 %v47, %v49
  %v51 = vrot.slane %v41, %v50
  %v53 = vunpack.c.l.s4 1966171168
  %v54 = vunpack.c.0.s8 %v53
  %v55 = vlaneseq
  %v56 = vshrl.u32 %v55, 7
  %v57 = vsub.s32 %v54, %v56
  %v58 = vrot.slane %v42, %v57
  %v60 = vunpack.c.l.s4 1966171168
  %v61 = vunpack.c.0.s8 %v60
  %v62 = vlaneseq
  %v63 = vshrl.u32 %v62, 7
  %v64 = vsub.s32 %v61, %v63
  %v65 = vrot.slane %v43, %v64
  %v67 = vunpack.c.l.s4 1966171168
  %v68 = vunpack.c.0.s8 %v67
  %v69 = vlaneseq
  %v70 = vshrl.u32 %v69, 7
  %v71 = vsub.s32 %v68, %v70
  %v72 = vrot.slane %v44, %v71
  %v73 = vcombine.low %v51, %v65
  %v74 = vcombine.high %v51, %v65
  %v75 = vcombine.low %v58, %v72
  %v76 = vcombine.high %v58, %v72
  %v78 = vunpack.c.l.s4 1966171168
  %v79 = vunpack.c.0.s8 %v78
  %v80 = vlaneseq
  %v81 = vshrl.u32 %v80, 7
  %v82 = vsub.s32 %v79, %v81
  %v83 = vrot.slane %v73, %v82
  %v85 = vunpack.c.l.s4 1966171168
  %v86 = vunpack.c.0.s8 %v85
  %v87 = vlaneseq
  %v88 = vshrl.u32 %v87, 7
  %v89 = vsub.s32 %v86, %v88
  %v90 = vrot.slane %v75, %v89
  %v92 = vunpack.c.l.s4 1966171168
  %v93 = vunpack.c.0.s8 %v92
  %v94 = vlaneseq
  %v95 = vshrl.u32 %v94, 7
  %v96 = vsub.s32 %v93, %v95
  %v97 = vrot.slane %v74, %v96
  %v99 = vunpack.c.l.s4 1966171168
  %v100 = vunpack.c.0.s8 %v99
  %v101 = vlaneseq
  %v102 = vshrl.u32 %v101, 7
  %v103 = vsub.s32 %v100, %v102
  %v104 = vrot.slane %v76, %v103
  %v105 = vcombine.high %v83, %v83
  %v106 = vcombine.high %v90, %v90
  %v107 = vcombine.high %v97, %v97
  %v108 = vcombine.high %v104, %v104
  %v109 = vld [vmem:[%s1] sm:$0xff]
  %v110 = vld [vmem:[%s1 + $0x8] sm:$0xff]
  %v111 = vld [vmem:[%s1 + $0x10] sm:$0xff]
  %v112 = vld [vmem:[%s1 + $0x18] sm:$0xff]
  %v113 = vlaneseq
  %v114 = vshrl.u32 %v113, 7
  %v115 = vsub.s32 0, %v114
  %v116 = vrot.slane %v83, %v115
  %v117 = vlaneseq
  %v118 = vshrl.u32 %v117, 7
  %v119 = vsub.s32 1, %v118
  %v120 = vrot.slane %v83, %v119
  %v121 = vlaneseq
  %v122 = vshrl.u32 %v121, 7
  %v123 = vsub.s32 2, %v122
  %v124 = vrot.slane %v83, %v123
  %v125 = vlaneseq
  %v126 = vshrl.u32 %v125, 7
  %v127 = vsub.s32 3, %v126
  %v128 = vrot.slane %v83, %v127
  %v129 = vlaneseq
  %v130 = vshrl.u32 %v129, 7
  %v131 = vsub.s32 0, %v130
  %v132 = vrot.slane %v97, %v131
  %v133 = vlaneseq
  %v134 = vshrl.u32 %v133, 7
  %v135 = vsub.s32 1, %v134
  %v136 = vrot.slane %v97, %v135
  %v137 = vlaneseq
  %v138 = vshrl.u32 %v137, 7
  %v139 = vsub.s32 2, %v138
  %v140 = vrot.slane %v97, %v139
  %v141 = vlaneseq
  %v142 = vshrl.u32 %v141, 7
  %v143 = vsub.s32 3, %v142
  %v144 = vrot.slane %v97, %v143
  %v145 = vlaneseq
  %v146 = vshrl.u32 %v145, 7
  %v147 = vsub.s32 0, %v146
  %v148 = vrot.slane %v105, %v147
  %v149 = vlaneseq
  %v150 = vshrl.u32 %v149, 7
  %v151 = vsub.s32 1, %v150
  %v152 = vrot.slane %v105, %v151
  %v153 = vlaneseq
  %v154 = vshrl.u32 %v153, 7
  %v155 = vsub.s32 2, %v154
  %v156 = vrot.slane %v105, %v155
  %v157 = vlaneseq
  %v158 = vshrl.u32 %v157, 7
  %v159 = vsub.s32 3, %v158
  %v160 = vrot.slane %v105, %v159
  %v161 = vlaneseq
  %v162 = vshrl.u32 %v161, 7
  %v163 = vsub.s32 0, %v162
  %v164 = vrot.slane %v107, %v163
  %v165 = vlaneseq
  %v166 = vshrl.u32 %v165, 7
  %v167 = vsub.s32 1, %v166
  %v168 = vrot.slane %v107, %v167
  %v169 = vlaneseq
  %v170 = vshrl.u32 %v169, 7
  %v171 = vsub.s32 2, %v170
  %v172 = vrot.slane %v107, %v171
  %v173 = vlaneseq
  %v174 = vshrl.u32 %v173, 7
  %v175 = vsub.s32 3, %v174
  %v176 = vrot.slane %v107, %v175
  %v177 = vlaneseq
  %v178 = vshrl.u32 %v177, 7
  %v179 = vsub.s32 0, %v178
  %v180 = vrot.slane %v90, %v179
  %v181 = vlaneseq
  %v182 = vshrl.u32 %v181, 7
  %v183 = vsub.s32 1, %v182
  %v184 = vrot.slane %v90, %v183
  %v185 = vlaneseq
  %v186 = vshrl.u32 %v185, 7
  %v187 = vsub.s32 2, %v186
  %v188 = vrot.slane %v90, %v187
  %v189 = vlaneseq
  %v190 = vshrl.u32 %v189, 7
  %v191 = vsub.s32 3, %v190
  %v192 = vrot.slane %v90, %v191
  %v193 = vlaneseq
  %v194 = vshrl.u32 %v193, 7
  %v195 = vsub.s32 0, %v194
  %v196 = vrot.slane %v104, %v195
  %v197 = vlaneseq
  %v198 = vshrl.u32 %v197, 7
  %v199 = vsub.s32 1, %v198
  %v200 = vrot.slane %v104, %v199
  %v201 = vlaneseq
  %v202 = vshrl.u32 %v201, 7
  %v203 = vsub.s32 2, %v202
  %v204 = vrot.slane %v104, %v203
  %v205 = vlaneseq
  %v206 = vshrl.u32 %v205, 7
  %v207 = vsub.s32 3, %v206
  %v208 = vrot.slane %v104, %v207
  %v209 = vlaneseq
  %v210 = vshrl.u32 %v209, 7
  %v211 = vsub.s32 0, %v210
  %v212 = vrot.slane %v106, %v211
  %v213 = vlaneseq
  %v214 = vshrl.u32 %v213, 7
  %v215 = vsub.s32 1, %v214
  %v216 = vrot.slane %v106, %v215
  %v217 = vlaneseq
  %v218 = vshrl.u32 %v217, 7
  %v219 = vsub.s32 2, %v218
  %v220 = vrot.slane %v106, %v219
  %v221 = vlaneseq
  %v222 = vshrl.u32 %v221, 7
  %v223 = vsub.s32 3, %v222
  %v224 = vrot.slane %v106, %v223
  %v225 = vlaneseq
  %v226 = vshrl.u32 %v225, 7
  %v227 = vsub.s32 0, %v226
  %v228 = vrot.slane %v108, %v227
  %v229 = vlaneseq
  %v230 = vshrl.u32 %v229, 7
  %v231 = vsub.s32 1, %v230
  %v232 = vrot.slane %v108, %v231
  %v233 = vlaneseq
  %v234 = vshrl.u32 %v233, 7
  %v235 = vsub.s32 2, %v234
  %v236 = vrot.slane %v108, %v235
  %v237 = vlaneseq
  %v238 = vshrl.u32 %v237, 7
  %v239 = vsub.s32 3, %v238
  %v240 = vrot.slane %v108, %v239
  %v273 = vadd.f32 %v116, %v109
  %v274 = vadd.f32 %v120, %v110
  %v275 = vadd.f32 %v124, %v111
  %v276 = vadd.f32 %v128, %v112
  %v277 = vadd.f32 %v132, %v109
  %v278 = vadd.f32 %v136, %v110
  %v279 = vadd.f32 %v140, %v111
  %v280 = vadd.f32 %v144, %v112
  %v281 = vadd.f32 %v148, %v109
  %v282 = vadd.f32 %v152, %v110
  %v283 = vadd.f32 %v156, %v111
  %v284 = vadd.f32 %v160, %v112
  %v285 = vadd.f32 %v164, %v109
  %v286 = vadd.f32 %v168, %v110
  %v287 = vadd.f32 %v172, %v111
  %v288 = vadd.f32 %v176, %v112
  %v289 = vadd.f32 %v180, %v109
  %v290 = vadd.f32 %v184, %v110
  %v291 = vadd.f32 %v188, %v111
  %v292 = vadd.f32 %v192, %v112
  %v293 = vadd.f32 %v196, %v109
  %v294 = vadd.f32 %v200, %v110
  %v295 = vadd.f32 %v204, %v111
  %v296 = vadd.f32 %v208, %v112
  %v297 = vadd.f32 %v212, %v109
  %v298 = vadd.f32 %v216, %v110
  %v299 = vadd.f32 %v220, %v111
  %v300 = vadd.f32 %v224, %v112
  %v301 = vadd.f32 %v228, %v109
  %v302 = vadd.f32 %v232, %v110
  %v303 = vadd.f32 %v236, %v111
  %v304 = vadd.f32 %v240, %v112
  %v305 = vmax.f32 %v273, 0.0
  %v306 = vmax.f32 %v274, 0.0
  %v307 = vmax.f32 %v275, 0.0
  %v308 = vmax.f32 %v276, 0.0
  %v309 = vmax.f32 %v277, 0.0
  %v310 = vmax.f32 %v278, 0.0
  %v311 = vmax.f32 %v279, 0.0
  %v312 = vmax.f32 %v280, 0.0
  %v313 = vmax.f32 %v281, 0.0
  %v314 = vmax.f32 %v282, 0.0
  %v315 = vmax.f32 %v283, 0.0
  %v316 = vmax.f32 %v284, 0.0
  %v317 = vmax.f32 %v285, 0.0
  %v318 = vmax.f32 %v286, 0.0
  %v319 = vmax.f32 %v287, 0.0
  %v320 = vmax.f32 %v288, 0.0
  %v321 = vmax.f32 %v289, 0.0
  %v322 = vmax.f32 %v290, 0.0
  %v323 = vmax.f32 %v291, 0.0
  %v324 = vmax.f32 %v292, 0.0
  %v325 = vmax.f32 %v293, 0.0
  %v326 = vmax.f32 %v294, 0.0
  %v327 = vmax.f32 %v295, 0.0
  %v328 = vmax.f32 %v296, 0.0
  %v329 = vmax.f32 %v297, 0.0
  %v330 = vmax.f32 %v298, 0.0
  %v331 = vmax.f32 %v299, 0.0
  %v332 = vmax.f32 %v300, 0.0
  %v333 = vmax.f32 %v301, 0.0
  %v334 = vmax.f32 %v302, 0.0
  %v335 = vmax.f32 %v303, 0.0
  %v336 = vmax.f32 %v304, 0.0
  %v337 = vpack.c.bf16 %v309, %v305
  %v338 = vpack.c.bf16 %v310, %v306
  %v339 = vpack.c.bf16 %v311, %v307
  %v340 = vpack.c.bf16 %v312, %v308
  %v341 = vpack.c.bf16 %v317, %v313
  %v342 = vpack.c.bf16 %v318, %v314
  %v343 = vpack.c.bf16 %v319, %v315
  %v344 = vpack.c.bf16 %v320, %v316
  %v345 = vpack.c.bf16 %v325, %v321
  %v346 = vpack.c.bf16 %v326, %v322
  %v347 = vpack.c.bf16 %v327, %v323
  %v348 = vpack.c.bf16 %v328, %v324
  %v349 = vpack.c.bf16 %v333, %v329
  %v350 = vpack.c.bf16 %v334, %v330
  %v351 = vpack.c.bf16 %v335, %v331
  %v352 = vpack.c.bf16 %v336, %v332
  %v353 = vld [vmem:[%s3] sm:$0xff]
  %v354 = vld [vmem:[%s3 + $0x8] sm:$0xff]
  %v355 = vld [vmem:[%s3 + $0x10] sm:$0xff]
  %v356 = vld [vmem:[%s3 + $0x18] sm:$0xff]
  %v357 = vld [vmem:[%s3 + $0x20] sm:$0xff]
  %v358 = vld [vmem:[%s3 + $0x28] sm:$0xff]
  %v359 = vld [vmem:[%s3 + $0x30] sm:$0xff]
  %v360 = vld [vmem:[%s3 + $0x38] sm:$0xff]
  %v361 = vld [vmem:[%s3 + $0x40] sm:$0xff]
  %v362 = vld [vmem:[%s3 + $0x48] sm:$0xff]
  %v363 = vld [vmem:[%s3 + $0x50] sm:$0xff]
  %v364 = vld [vmem:[%s3 + $0x58] sm:$0xff]
  %v365 = vld [vmem:[%s3 + $0x60] sm:$0xff]
  %v366 = vld [vmem:[%s3 + $0x68] sm:$0xff]
  %v367 = vld [vmem:[%s3 + $0x70] sm:$0xff]
  %v368 = vld [vmem:[%s3 + $0x78] sm:$0xff]
  %v369 = vld [vmem:[%s3 + $0x80] sm:$0xff]
  %v370 = vld [vmem:[%s3 + $0x88] sm:$0xff]
  %v371 = vld [vmem:[%s3 + $0x90] sm:$0xff]
  %v372 = vld [vmem:[%s3 + $0x98] sm:$0xff]
  %v373 = vld [vmem:[%s3 + $0xa0] sm:$0xff]
  %v374 = vld [vmem:[%s3 + $0xa8] sm:$0xff]
  %v375 = vld [vmem:[%s3 + $0xb0] sm:$0xff]
  %v376 = vld [vmem:[%s3 + $0xb8] sm:$0xff]
  %v377 = vld [vmem:[%s3 + $0xc0] sm:$0xff]
  %v378 = vld [vmem:[%s3 + $0xc8] sm:$0xff]
  %v379 = vld [vmem:[%s3 + $0xd0] sm:$0xff]
  %v380 = vld [vmem:[%s3 + $0xd8] sm:$0xff]
  %v381 = vld [vmem:[%s3 + $0xe0] sm:$0xff]
  %v382 = vld [vmem:[%s3 + $0xe8] sm:$0xff]
  %v383 = vld [vmem:[%s3 + $0xf0] sm:$0xff]
  %v384 = vld [vmem:[%s3 + $0xf8] sm:$0xff]
  %v385 = vld [vmem:[%s3 + $0x100] sm:$0xff]
  %v386 = vld [vmem:[%s3 + $0x108] sm:$0xff]
  %v387 = vld [vmem:[%s3 + $0x110] sm:$0xff]
  %v388 = vld [vmem:[%s3 + $0x118] sm:$0xff]
  %v389 = vld [vmem:[%s3 + $0x120] sm:$0xff]
  %v390 = vld [vmem:[%s3 + $0x128] sm:$0xff]
  %v391 = vld [vmem:[%s3 + $0x130] sm:$0xff]
  %v392 = vld [vmem:[%s3 + $0x138] sm:$0xff]
  %v393 = vld [vmem:[%s3 + $0x140] sm:$0xff]
  %v394 = vld [vmem:[%s3 + $0x148] sm:$0xff]
  %v395 = vld [vmem:[%s3 + $0x150] sm:$0xff]
  %v396 = vld [vmem:[%s3 + $0x158] sm:$0xff]
  %v397 = vld [vmem:[%s3 + $0x160] sm:$0xff]
  %v398 = vld [vmem:[%s3 + $0x168] sm:$0xff]
  %v399 = vld [vmem:[%s3 + $0x170] sm:$0xff]
  %v400 = vld [vmem:[%s3 + $0x178] sm:$0xff]
  %v401 = vld [vmem:[%s3 + $0x180] sm:$0xff]
  %v402 = vld [vmem:[%s3 + $0x188] sm:$0xff]
  %v403 = vld [vmem:[%s3 + $0x190] sm:$0xff]
  %v404 = vld [vmem:[%s3 + $0x198] sm:$0xff]
  %v405 = vld [vmem:[%s3 + $0x1a0] sm:$0xff]
  %v406 = vld [vmem:[%s3 + $0x1a8] sm:$0xff]
  %v407 = vld [vmem:[%s3 + $0x1b0] sm:$0xff]
  %v408 = vld [vmem:[%s3 + $0x1b8] sm:$0xff]
  %v409 = vld [vmem:[%s3 + $0x1c0] sm:$0xff]
  %v410 = vld [vmem:[%s3 + $0x1c8] sm:$0xff]
  %v411 = vld [vmem:[%s3 + $0x1d0] sm:$0xff]
  %v412 = vld [vmem:[%s3 + $0x1d8] sm:$0xff]
  %v413 = vld [vmem:[%s3 + $0x1e0] sm:$0xff]
  %v414 = vld [vmem:[%s3 + $0x1e8] sm:$0xff]
  %v415 = vld [vmem:[%s3 + $0x1f0] sm:$0xff]
  %v416 = vld [vmem:[%s3 + $0x1f8] sm:$0xff]
  %v417 = vld [vmem:[%s4] sm:$0x3]
  %v419 = vlaneseq
  %v420 = vshrl.u32 %v419, 7
  %v421 = vsub.s32 0, %v420
  %v422 = vrot.slane %v417, %v421
  %v423 = vlaneseq
  %v424 = vshrl.u32 %v423, 7
  %v425 = vsub.s32 1, %v424
  %v426 = vrot.slane %v417, %v425
  %v493 = vunpack.c.l.b16 %v353
  %v494 = vunpack.c.h.b16 %v353
  %v495 = vunpack.c.l.b16 %v354
  %v496 = vunpack.c.h.b16 %v354
  %v497 = vunpack.c.l.b16 %v355
  %v498 = vunpack.c.h.b16 %v355
  %v499 = vunpack.c.l.b16 %v356
  %v500 = vunpack.c.h.b16 %v356
  %v501 = vunpack.c.l.b16 %v357
  %v502 = vunpack.c.h.b16 %v357
  %v503 = vunpack.c.l.b16 %v358
  %v504 = vunpack.c.h.b16 %v358
  %v505 = vunpack.c.l.b16 %v359
  %v506 = vunpack.c.h.b16 %v359
  %v507 = vunpack.c.l.b16 %v360
  %v508 = vunpack.c.h.b16 %v360
  %v509 = vunpack.c.l.b16 %v361
  %v510 = vunpack.c.h.b16 %v361
  %v511 = vunpack.c.l.b16 %v362
  %v512 = vunpack.c.h.b16 %v362
  %v513 = vunpack.c.l.b16 %v363
  %v514 = vunpack.c.h.b16 %v363
  %v515 = vunpack.c.l.b16 %v364
  %v516 = vunpack.c.h.b16 %v364
  %v517 = vunpack.c.l.b16 %v365
  %v518 = vunpack.c.h.b16 %v365
  %v519 = vunpack.c.l.b16 %v366
  %v520 = vunpack.c.h.b16 %v366
  %v521 = vunpack.c.l.b16 %v367
  %v522 = vunpack.c.h.b16 %v367
  %v523 = vunpack.c.l.b16 %v368
  %v524 = vunpack.c.h.b16 %v368
  %v525 = vunpack.c.l.b16 %v369
  %v526 = vunpack.c.h.b16 %v369
  %v527 = vunpack.c.l.b16 %v370
  %v528 = vunpack.c.h.b16 %v370
  %v529 = vunpack.c.l.b16 %v371
  %v530 = vunpack.c.h.b16 %v371
  %v531 = vunpack.c.l.b16 %v372
  %v532 = vunpack.c.h.b16 %v372
  %v533 = vunpack.c.l.b16 %v373
  %v534 = vunpack.c.h.b16 %v373
  %v535 = vunpack.c.l.b16 %v374
  %v536 = vunpack.c.h.b16 %v374
  %v537 = vunpack.c.l.b16 %v375
  %v538 = vunpack.c.h.b16 %v375
  %v539 = vunpack.c.l.b16 %v376
  %v540 = vunpack.c.h.b16 %v376
  %v541 = vunpack.c.l.b16 %v377
  %v542 = vunpack.c.h.b16 %v377
  %v543 = vunpack.c.l.b16 %v378
  %v544 = vunpack.c.h.b16 %v378
  %v545 = vunpack.c.l.b16 %v379
  %v546 = vunpack.c.h.b16 %v379
  %v547 = vunpack.c.l.b16 %v380
  %v548 = vunpack.c.h.b16 %v380
  %v549 = vunpack.c.l.b16 %v381
  %v550 = vunpack.c.h.b16 %v381
  %v551 = vunpack.c.l.b16 %v382
  %v552 = vunpack.c.h.b16 %v382
  %v553 = vunpack.c.l.b16 %v383
  %v554 = vunpack.c.h.b16 %v383
  %v555 = vunpack.c.l.b16 %v384
  %v556 = vunpack.c.h.b16 %v384
  %v557 = vunpack.c.l.b16 %v385
  %v558 = vunpack.c.h.b16 %v385
  %v559 = vunpack.c.l.b16 %v386
  %v560 = vunpack.c.h.b16 %v386
  %v561 = vunpack.c.l.b16 %v387
  %v562 = vunpack.c.h.b16 %v387
  %v563 = vunpack.c.l.b16 %v388
  %v564 = vunpack.c.h.b16 %v388
  %v565 = vunpack.c.l.b16 %v389
  %v566 = vunpack.c.h.b16 %v389
  %v567 = vunpack.c.l.b16 %v390
  %v568 = vunpack.c.h.b16 %v390
  %v569 = vunpack.c.l.b16 %v391
  %v570 = vunpack.c.h.b16 %v391
  %v571 = vunpack.c.l.b16 %v392
  %v572 = vunpack.c.h.b16 %v392
  %v573 = vunpack.c.l.b16 %v393
  %v574 = vunpack.c.h.b16 %v393
  %v575 = vunpack.c.l.b16 %v394
  %v576 = vunpack.c.h.b16 %v394
  %v577 = vunpack.c.l.b16 %v395
  %v578 = vunpack.c.h.b16 %v395
  %v579 = vunpack.c.l.b16 %v396
  %v580 = vunpack.c.h.b16 %v396
  %v581 = vunpack.c.l.b16 %v397
  %v582 = vunpack.c.h.b16 %v397
  %v583 = vunpack.c.l.b16 %v398
  %v584 = vunpack.c.h.b16 %v398
  %v585 = vunpack.c.l.b16 %v399
  %v586 = vunpack.c.h.b16 %v399
  %v587 = vunpack.c.l.b16 %v400
  %v588 = vunpack.c.h.b16 %v400
  %v589 = vunpack.c.l.b16 %v401
  %v590 = vunpack.c.h.b16 %v401
  %v591 = vunpack.c.l.b16 %v402
  %v592 = vunpack.c.h.b16 %v402
  %v593 = vunpack.c.l.b16 %v403
  %v594 = vunpack.c.h.b16 %v403
  %v595 = vunpack.c.l.b16 %v404
  %v596 = vunpack.c.h.b16 %v404
  %v597 = vunpack.c.l.b16 %v405
  %v598 = vunpack.c.h.b16 %v405
  %v599 = vunpack.c.l.b16 %v406
  %v600 = vunpack.c.h.b16 %v406
  %v601 = vunpack.c.l.b16 %v407
  %v602 = vunpack.c.h.b16 %v407
  %v603 = vunpack.c.l.b16 %v408
  %v604 = vunpack.c.h.b16 %v408
  %v605 = vunpack.c.l.b16 %v409
  %v606 = vunpack.c.h.b16 %v409
  %v607 = vunpack.c.l.b16 %v410
  %v608 = vunpack.c.h.b16 %v410
  %v609 = vunpack.c.l.b16 %v411
  %v610 = vunpack.c.h.b16 %v411
  %v611 = vunpack.c.l.b16 %v412
  %v612 = vunpack.c.h.b16 %v412
  %v613 = vunpack.c.l.b16 %v413
  %v614 = vunpack.c.h.b16 %v413
  %v615 = vunpack.c.l.b16 %v414
  %v616 = vunpack.c.h.b16 %v414
  %v617 = vunpack.c.l.b16 %v415
  %v618 = vunpack.c.h.b16 %v415
  %v619 = vunpack.c.l.b16 %v416
  %v620 = vunpack.c.h.b16 %v416
  %v621 = vpack.c.b16 %v495, %v493
  %v622 = vpack.c.b16 %v496, %v494
  %v623 = vpack.c.b16 %v499, %v497
  %v624 = vpack.c.b16 %v500, %v498
  %v625 = vpack.c.b16 %v503, %v501
  %v626 = vpack.c.b16 %v504, %v502
  %v627 = vpack.c.b16 %v507, %v505
  %v628 = vpack.c.b16 %v508, %v506
  %v629 = vpack.c.b16 %v511, %v509
  %v630 = vpack.c.b16 %v512, %v510
  %v631 = vpack.c.b16 %v515, %v513
  %v632 = vpack.c.b16 %v516, %v514
  %v633 = vpack.c.b16 %v519, %v517
  %v634 = vpack.c.b16 %v520, %v518
  %v635 = vpack.c.b16 %v523, %v521
  %v636 = vpack.c.b16 %v524, %v522
  %v637 = vpack.c.b16 %v527, %v525
  %v638 = vpack.c.b16 %v528, %v526
  %v639 = vpack.c.b16 %v531, %v529
  %v640 = vpack.c.b16 %v532, %v530
  %v641 = vpack.c.b16 %v535, %v533
  %v642 = vpack.c.b16 %v536, %v534
  %v643 = vpack.c.b16 %v539, %v537
  %v644 = vpack.c.b16 %v540, %v538
  %v645 = vpack.c.b16 %v543, %v541
  %v646 = vpack.c.b16 %v544, %v542
  %v647 = vpack.c.b16 %v547, %v545
  %v648 = vpack.c.b16 %v548, %v546
  %v649 = vpack.c.b16 %v551, %v549
  %v650 = vpack.c.b16 %v552, %v550
  %v651 = vpack.c.b16 %v555, %v553
  %v652 = vpack.c.b16 %v556, %v554
  %v653 = vpack.c.b16 %v559, %v557
  %v654 = vpack.c.b16 %v560, %v558
  %v655 = vpack.c.b16 %v563, %v561
  %v656 = vpack.c.b16 %v564, %v562
  %v657 = vpack.c.b16 %v567, %v565
  %v658 = vpack.c.b16 %v568, %v566
  %v659 = vpack.c.b16 %v571, %v569
  %v660 = vpack.c.b16 %v572, %v570
  %v661 = vpack.c.b16 %v575, %v573
  %v662 = vpack.c.b16 %v576, %v574
  %v663 = vpack.c.b16 %v579, %v577
  %v664 = vpack.c.b16 %v580, %v578
  %v665 = vpack.c.b16 %v583, %v581
  %v666 = vpack.c.b16 %v584, %v582
  %v667 = vpack.c.b16 %v587, %v585
  %v668 = vpack.c.b16 %v588, %v586
  %v669 = vpack.c.b16 %v591, %v589
  %v670 = vpack.c.b16 %v592, %v590
  %v671 = vpack.c.b16 %v595, %v593
  %v672 = vpack.c.b16 %v596, %v594
  %v673 = vpack.c.b16 %v599, %v597
  %v674 = vpack.c.b16 %v600, %v598
  %v675 = vpack.c.b16 %v603, %v601
  %v676 = vpack.c.b16 %v604, %v602
  %v677 = vpack.c.b16 %v607, %v605
  %v678 = vpack.c.b16 %v608, %v606
  %v679 = vpack.c.b16 %v611, %v609
  %v680 = vpack.c.b16 %v612, %v610
  %v681 = vpack.c.b16 %v615, %v613
  %v682 = vpack.c.b16 %v616, %v614
  %v683 = vpack.c.b16 %v619, %v617
  %v684 = vpack.c.b16 %v620, %v618
  %749 = vmatprep.subr.bf16.mxu0 %v622
  %750 = vmatpush1.bf16.msra.mxu0 %v621
  %751 = vmatprep.subr.bf16.mxu0 %v624
  %752 = vmatpush1.bf16.msra.mxu0 %v623
  %753 = vmatprep.subr.bf16.mxu0 %v626
  %754 = vmatpush1.bf16.msra.mxu0 %v625
  %755 = vmatprep.subr.bf16.mxu0 %v628
  %756 = vmatpush1.bf16.msra.mxu0 %v627
  %757 = vmatprep.subr.bf16.mxu0 %v630
  %758 = vmatpush1.bf16.msra.mxu0 %v629
  %759 = vmatprep.subr.bf16.mxu0 %v632
  %760 = vmatpush1.bf16.msra.mxu0 %v631
  %761 = vmatprep.subr.bf16.mxu0 %v634
  %762 = vmatpush1.bf16.msra.mxu0 %v633
  %763 = vmatprep.subr.bf16.mxu0 %v636
  %764 = vmatpush1.bf16.msra.mxu0 %v635
  %765 = vmatprep.subr.bf16.mxu0 %v638
  %766 = vmatpush1.bf16.msra.mxu0 %v637
  %767 = vmatprep.subr.bf16.mxu0 %v640
  %768 = vmatpush1.bf16.msra.mxu0 %v639
  %769 = vmatprep.subr.bf16.mxu0 %v642
  %770 = vmatpush1.bf16.msra.mxu0 %v641
  %771 = vmatprep.subr.bf16.mxu0 %v644
  %772 = vmatpush1.bf16.msra.mxu0 %v643
  %773 = vmatprep.subr.bf16.mxu0 %v646
  %774 = vmatpush1.bf16.msra.mxu0 %v645
  %775 = vmatprep.subr.bf16.mxu0 %v648
  %776 = vmatpush1.bf16.msra.mxu0 %v647
  %777 = vmatprep.subr.bf16.mxu0 %v650
  %778 = vmatpush1.bf16.msra.mxu0 %v649
  %779 = vmatprep.subr.bf16.mxu0 %v652
  %780 = vmatpush1.bf16.msra.mxu0 %v651
  %781 = vmatprep.mubr.bf16.mxu0 %v338
  %782 = vmatmul.mubr.bf16.gmra.mrb[0].mxu0 %v337
  %v783 = vpop.f32.mrb[0].mxu0
  %v784 = vadd.f32 %v422, %v783
  %v785 = vpop.f32.mrb[0].mxu0
  %v786 = vadd.f32 %v426, %v785
  %v787 = vpop.f32.mrb[0].mxu0
  %v788 = vadd.f32 %v422, %v787
  %v789 = vpop.f32.mrb[0].mxu0
  %v790 = vadd.f32 %v426, %v789
  %791 = vmatprep.mubr.bf16.mxu0 %v342
  %792 = vmatmul.mubr.bf16.gmra.mrb[0].mxu0 %v341
  %v793 = vpop.f32.mrb[0].mxu0
  %v794 = vadd.f32 %v422, %v793
  %v795 = vpop.f32.mrb[0].mxu0
  %v796 = vadd.f32 %v426, %v795
  %v797 = vpop.f32.mrb[0].mxu0
  %v798 = vadd.f32 %v422, %v797
  %v799 = vpop.f32.mrb[0].mxu0
  %v800 = vadd.f32 %v426, %v799
  %801 = vmatprep.mubr.bf16.mxu0 %v346
  %802 = vmatmul.mubr.bf16.gmra.mrb[0].mxu0 %v345
  %v803 = vpop.f32.mrb[0].mxu0
  %v804 = vadd.f32 %v422, %v803
  %v805 = vpop.f32.mrb[0].mxu0
  %v806 = vadd.f32 %v426, %v805
  %v807 = vpop.f32.mrb[0].mxu0
  %v808 = vadd.f32 %v422, %v807
  %v809 = vpop.f32.mrb[0].mxu0
  %v810 = vadd.f32 %v426, %v809
  %811 = vmatprep.mubr.bf16.mxu0 %v350
  %812 = vmatmul.mubr.bf16.gmra.mrb[0].mxu0 %v349
  %v813 = vpop.f32.mrb[0].mxu0
  %v814 = vadd.f32 %v422, %v813
  %v815 = vpop.f32.mrb[0].mxu0
  %v816 = vadd.f32 %v426, %v815
  %v817 = vpop.f32.mrb[0].mxu0
  %v818 = vadd.f32 %v422, %v817
  %v819 = vpop.f32.mrb[0].mxu0
  %v820 = vadd.f32 %v426, %v819
  %821 = vdwg.mxu0
  %822 = vmatprep.subr.bf16.mxu0 %v654
  %823 = vmatpush1.bf16.msra.mxu0 %v653
  %824 = vmatprep.subr.bf16.mxu0 %v656
  %825 = vmatpush1.bf16.msra.mxu0 %v655
  %826 = vmatprep.subr.bf16.mxu0 %v658
  %827 = vmatpush1.bf16.msra.mxu0 %v657
  %828 = vmatprep.subr.bf16.mxu0 %v660
  %829 = vmatpush1.bf16.msra.mxu0 %v659
  %830 = vmatprep.subr.bf16.mxu0 %v662
  %831 = vmatpush1.bf16.msra.mxu0 %v661
  %832 = vmatprep.subr.bf16.mxu0 %v664
  %833 = vmatpush1.bf16.msra.mxu0 %v663
  %834 = vmatprep.subr.bf16.mxu0 %v666
  %835 = vmatpush1.bf16.msra.mxu0 %v665
  %836 = vmatprep.subr.bf16.mxu0 %v668
  %837 = vmatpush1.bf16.msra.mxu0 %v667
  %838 = vmatprep.subr.bf16.mxu0 %v670
  %839 = vmatpush1.bf16.msra.mxu0 %v669
  %840 = vmatprep.subr.bf16.mxu0 %v672
  %841 = vmatpush1.bf16.msra.mxu0 %v671
  %842 = vmatprep.subr.bf16.mxu0 %v674
  %843 = vmatpush1.bf16.msra.mxu0 %v673
  %844 = vmatprep.subr.bf16.mxu0 %v676
  %845 = vmatpush1.bf16.msra.mxu0 %v675
  %846 = vmatprep.subr.bf16.mxu0 %v678
  %847 = vmatpush1.bf16.msra.mxu0 %v677
  %848 = vmatprep.subr.bf16.mxu0 %v680
  %849 = vmatpush1.bf16.msra.mxu0 %v679
  %850 = vmatprep.subr.bf16.mxu0 %v682
  %851 = vmatpush1.bf16.msra.mxu0 %v681
  %852 = vmatprep.subr.bf16.mxu0 %v684
  %853 = vmatpush1.bf16.msra.mxu0 %v683
  %854 = vmatprep.mubr.bf16.mxu0 %v340
  %855 = vmatmul.mubr.bf16.gmra.mrb[0].mxu0 %v339
  %v856 = vpop.f32.mrb[0].mxu0
  %v857 = vadd.f32 %v784, %v856
  %v858 = vpop.f32.mrb[0].mxu0
  %v859 = vadd.f32 %v786, %v858
  %v860 = vpop.f32.mrb[0].mxu0
  %v861 = vadd.f32 %v788, %v860
  %v862 = vpop.f32.mrb[0].mxu0
  %v863 = vadd.f32 %v790, %v862
  %864 = vmatprep.mubr.bf16.mxu0 %v344
  %865 = vmatmul.mubr.bf16.gmra.mrb[0].mxu0 %v343
  %v866 = vpop.f32.mrb[0].mxu0
  %v867 = vadd.f32 %v794, %v866
  %v868 = vpop.f32.mrb[0].mxu0
  %v869 = vadd.f32 %v796, %v868
  %v870 = vpop.f32.mrb[0].mxu0
  %v871 = vadd.f32 %v798, %v870
  %v872 = vpop.f32.mrb[0].mxu0
  %v873 = vadd.f32 %v800, %v872
  %874 = vmatprep.mubr.bf16.mxu0 %v348
  %875 = vmatmul.mubr.bf16.gmra.mrb[0].mxu0 %v347
  %v876 = vpop.f32.mrb[0].mxu0
  %v877 = vadd.f32 %v804, %v876
  %v878 = vpop.f32.mrb[0].mxu0
  %v879 = vadd.f32 %v806, %v878
  %v880 = vpop.f32.mrb[0].mxu0
  %v881 = vadd.f32 %v808, %v880
  %v882 = vpop.f32.mrb[0].mxu0
  %v883 = vadd.f32 %v810, %v882
  %884 = vmatprep.mubr.bf16.mxu0 %v352
  %885 = vmatmul.mubr.bf16.gmra.mrb[0].mxu0 %v351
  %v886 = vpop.f32.mrb[0].mxu0
  %v887 = vadd.f32 %v814, %v886
  %v888 = vpop.f32.mrb[0].mxu0
  %v889 = vadd.f32 %v816, %v888
  %v890 = vpop.f32.mrb[0].mxu0
  %v891 = vadd.f32 %v818, %v890
  %v892 = vpop.f32.mrb[0].mxu0
  %v893 = vadd.f32 %v820, %v892
  %894 = vdwg.mxu0
  %v895 = vmax.f32 %v857, 0.0
  %v896 = vmax.f32 %v859, 0.0
  %v897 = vmax.f32 %v861, 0.0
  %v898 = vmax.f32 %v863, 0.0
  %v899 = vmax.f32 %v867, 0.0
  %v900 = vmax.f32 %v869, 0.0
  %v901 = vmax.f32 %v871, 0.0
  %v902 = vmax.f32 %v873, 0.0
  %v903 = vmax.f32 %v877, 0.0
  %v904 = vmax.f32 %v879, 0.0
  %v905 = vmax.f32 %v881, 0.0
  %v906 = vmax.f32 %v883, 0.0
  %v907 = vmax.f32 %v887, 0.0
  %v908 = vmax.f32 %v889, 0.0
  %v909 = vmax.f32 %v891, 0.0
  %v910 = vmax.f32 %v893, 0.0
  %v911 = vpack.c.bf16 %v897, %v895
  %v912 = vpack.c.bf16 %v898, %v896
  %v913 = vpack.c.bf16 %v901, %v899
  %v914 = vpack.c.bf16 %v902, %v900
  %v915 = vpack.c.bf16 %v905, %v903
  %v916 = vpack.c.bf16 %v906, %v904
  %v917 = vpack.c.bf16 %v909, %v907
  %v918 = vpack.c.bf16 %v910, %v908
  %v919 = vld [vmem:[%s5] sm:$0xf]
  %v920 = vld [vmem:[%s5 + $0x4] sm:$0xf]
  %v921 = vld [vmem:[%s5 + $0x8] sm:$0xf]
  %v922 = vld [vmem:[%s5 + $0xc] sm:$0xf]
  %v923 = vld [vmem:[%s5 + $0x10] sm:$0xf]
  %v924 = vld [vmem:[%s5 + $0x14] sm:$0xf]
  %v925 = vld [vmem:[%s5 + $0x18] sm:$0xf]
  %v926 = vld [vmem:[%s5 + $0x1c] sm:$0xf]
  %v927 = vld [vmem:[%s5 + $0x20] sm:$0xf]
  %v928 = vld [vmem:[%s5 + $0x24] sm:$0xf]
  %v929 = vld [vmem:[%s5 + $0x28] sm:$0xf]
  %v930 = vld [vmem:[%s5 + $0x2c] sm:$0xf]
  %v931 = vld [vmem:[%s5 + $0x30] sm:$0xf]
  %v932 = vld [vmem:[%s5 + $0x34] sm:$0xf]
  %v933 = vld [vmem:[%s5 + $0x38] sm:$0xf]
  %v934 = vld [vmem:[%s5 + $0x3c] sm:$0xf]
  %v935 = vld [vmem:[%s5 + $0x40] sm:$0xf]
  %v936 = vld [vmem:[%s5 + $0x44] sm:$0xf]
  %v937 = vld [vmem:[%s5 + $0x48] sm:$0xf]
  %v938 = vld [vmem:[%s5 + $0x4c] sm:$0xf]
  %v939 = vld [vmem:[%s5 + $0x50] sm:$0xf]
  %v940 = vld [vmem:[%s5 + $0x54] sm:$0xf]
  %v941 = vld [vmem:[%s5 + $0x58] sm:$0xf]
  %v942 = vld [vmem:[%s5 + $0x5c] sm:$0xf]
  %v943 = vld [vmem:[%s5 + $0x60] sm:$0xf]
  %v944 = vld [vmem:[%s5 + $0x64] sm:$0xf]
  %v945 = vld [vmem:[%s5 + $0x68] sm:$0xf]
  %v946 = vld [vmem:[%s5 + $0x6c] sm:$0xf]
  %v947 = vld [vmem:[%s5 + $0x70] sm:$0xf]
  %v948 = vld [vmem:[%s5 + $0x74] sm:$0xf]
  %v949 = vld [vmem:[%s5 + $0x78] sm:$0xf]
  %v950 = vld [vmem:[%s5 + $0x7c] sm:$0xf]
  %v951 = vld [vmem:[%s6] sm:$0x1]
  %v953 = vlaneseq
  %v954 = vshrl.u32 %v953, 7
  %v955 = vsub.s32 0, %v954
  %v956 = vrot.slane %v951, %v955
  %v990 = vunpack.c.l.b16 %v919
  %v991 = vunpack.c.l.b16 %v920
  %v992 = vunpack.c.l.b16 %v921
  %v993 = vunpack.c.l.b16 %v922
  %v994 = vunpack.c.l.b16 %v923
  %v995 = vunpack.c.l.b16 %v924
  %v996 = vunpack.c.l.b16 %v925
  %v997 = vunpack.c.l.b16 %v926
  %v998 = vunpack.c.l.b16 %v927
  %v999 = vunpack.c.l.b16 %v928
  %v1000 = vunpack.c.l.b16 %v929
  %v1001 = vunpack.c.l.b16 %v930
  %v1002 = vunpack.c.l.b16 %v931
  %v1003 = vunpack.c.l.b16 %v932
  %v1004 = vunpack.c.l.b16 %v933
  %v1005 = vunpack.c.l.b16 %v934
  %v1006 = vunpack.c.l.b16 %v935
  %v1007 = vunpack.c.l.b16 %v936
  %v1008 = vunpack.c.l.b16 %v937
  %v1009 = vunpack.c.l.b16 %v938
  %v1010 = vunpack.c.l.b16 %v939
  %v1011 = vunpack.c.l.b16 %v940
  %v1012 = vunpack.c.l.b16 %v941
  %v1013 = vunpack.c.l.b16 %v942
  %v1014 = vunpack.c.l.b16 %v943
  %v1015 = vunpack.c.l.b16 %v944
  %v1016 = vunpack.c.l.b16 %v945
  %v1017 = vunpack.c.l.b16 %v946
  %v1018 = vunpack.c.l.b16 %v947
  %v1019 = vunpack.c.l.b16 %v948
  %v1020 = vunpack.c.l.b16 %v949
  %v1021 = vunpack.c.l.b16 %v950
  %v1022 = vpack.c.b16 %v991, %v990
  %v1023 = vpack.c.b16 %v993, %v992
  %v1024 = vpack.c.b16 %v995, %v994
  %v1025 = vpack.c.b16 %v997, %v996
  %v1026 = vpack.c.b16 %v999, %v998
  %v1027 = vpack.c.b16 %v1001, %v1000
  %v1028 = vpack.c.b16 %v1003, %v1002
  %v1029 = vpack.c.b16 %v1005, %v1004
  %v1030 = vpack.c.b16 %v1007, %v1006
  %v1031 = vpack.c.b16 %v1009, %v1008
  %v1032 = vpack.c.b16 %v1011, %v1010
  %v1033 = vpack.c.b16 %v1013, %v1012
  %v1034 = vpack.c.b16 %v1015, %v1014
  %v1035 = vpack.c.b16 %v1017, %v1016
  %v1036 = vpack.c.b16 %v1019, %v1018
  %v1037 = vpack.c.b16 %v1021, %v1020
  %1054 = vmatprep.subr.bf16.mxu0 0
  %1055 = vmatpush1.bf16.msra.mxu0 %v1022
  %1056 = vmatprep.subr.bf16.mxu0 0
  %1057 = vmatpush1.bf16.msra.mxu0 %v1023
  %1058 = vmatprep.subr.bf16.mxu0 0
  %1059 = vmatpush1.bf16.msra.mxu0 %v1024
  %1060 = vmatprep.subr.bf16.mxu0 0
  %1061 = vmatpush1.bf16.msra.mxu0 %v1025
  %1062 = vmatprep.subr.bf16.mxu0 0
  %1063 = vmatpush1.bf16.msra.mxu0 %v1026
  %1064 = vmatprep.subr.bf16.mxu0 0
  %1065 = vmatpush1.bf16.msra.mxu0 %v1027
  %1066 = vmatprep.subr.bf16.mxu0 0
  %1067 = vmatpush1.bf16.msra.mxu0 %v1028
  %1068 = vmatprep.subr.bf16.mxu0 0
  %1069 = vmatpush1.bf16.msra.mxu0 %v1029
  %1070 = vmatprep.subr.bf16.mxu0 0
  %1071 = vmatpush1.bf16.msra.mxu0 %v1030
  %1072 = vmatprep.subr.bf16.mxu0 0
  %1073 = vmatpush1.bf16.msra.mxu0 %v1031
  %1074 = vmatprep.subr.bf16.mxu0 0
  %1075 = vmatpush1.bf16.msra.mxu0 %v1032
  %1076 = vmatprep.subr.bf16.mxu0 0
  %1077 = vmatpush1.bf16.msra.mxu0 %v1033
  %1078 = vmatprep.subr.bf16.mxu0 0
  %1079 = vmatpush1.bf16.msra.mxu0 %v1034
  %1080 = vmatprep.subr.bf16.mxu0 0
  %1081 = vmatpush1.bf16.msra.mxu0 %v1035
  %1082 = vmatprep.subr.bf16.mxu0 0
  %1083 = vmatpush1.bf16.msra.mxu0 %v1036
  %1084 = vmatprep.subr.bf16.mxu0 0
  %1085 = vmatpush1.bf16.msra.mxu0 %v1037
  %1086 = vmatprep.mubr.bf16.mxu0 %v912
  %1087 = vmatmul.mubr.bf16.gmra.mrb[0].mxu0 %v911
  %v1088 = vpop.f32.mrb[0].mxu0
  %v1089 = vadd.f32 %v956, %v1088
  %v1090 = vpop.f32.mrb[0].mxu0
  %v1091 = vpop.f32.mrb[0].mxu0
  %v1092 = vadd.f32 %v956, %v1091
  %v1093 = vpop.f32.mrb[0].mxu0
  %1094 = vmatprep.mubr.bf16.mxu0 %v914
  %1095 = vmatmul.mubr.bf16.gmra.mrb[0].mxu0 %v913
  %v1096 = vpop.f32.mrb[0].mxu0
  %v1097 = vadd.f32 %v956, %v1096
  %v1098 = vpop.f32.mrb[0].mxu0
  %v1099 = vpop.f32.mrb[0].mxu0
  %v1100 = vadd.f32 %v956, %v1099
  %v1101 = vpop.f32.mrb[0].mxu0
  %1102 = vmatprep.mubr.bf16.mxu0 %v916
  %1103 = vmatmul.mubr.bf16.gmra.mrb[0].mxu0 %v915
  %v1104 = vpop.f32.mrb[0].mxu0
  %v1105 = vadd.f32 %v956, %v1104
  %v1106 = vpop.f32.mrb[0].mxu0
  %v1107 = vpop.f32.mrb[0].mxu0
  %v1108 = vadd.f32 %v956, %v1107
  %v1109 = vpop.f32.mrb[0].mxu0
  %1110 = vmatprep.mubr.bf16.mxu0 %v918
  %1111 = vmatmul.mubr.bf16.gmra.mrb[0].mxu0 %v917
  %v1112 = vpop.f32.mrb[0].mxu0
  %v1113 = vadd.f32 %v956, %v1112
  %v1114 = vpop.f32.mrb[0].mxu0
  %v1115 = vpop.f32.mrb[0].mxu0
  %v1116 = vadd.f32 %v956, %v1115
  %v1117 = vpop.f32.mrb[0].mxu0
  %1118 = vdwg.mxu0
  %v1119 = vmax.f32 %v1089, 0.0
  %v1120 = vmax.f32 %v1092, 0.0
  %v1121 = vmax.f32 %v1097, 0.0
  %v1122 = vmax.f32 %v1100, 0.0
  %v1123 = vmax.f32 %v1105, 0.0
  %v1124 = vmax.f32 %v1108, 0.0
  %v1125 = vmax.f32 %v1113, 0.0
  %v1126 = vmax.f32 %v1116, 0.0
  %v1127 = vpack.c.bf16 %v1120, %v1119
  %v1128 = vpack.c.bf16 %v1122, %v1121
  %v1129 = vpack.c.bf16 %v1124, %v1123
  %v1130 = vpack.c.bf16 %v1126, %v1125
  %v1131 = vld [vmem:[%s7] sm:$0xf]
  %v1132 = vld [vmem:[%s7 + $0x4] sm:$0xf]
  %v1133 = vld [vmem:[%s7 + $0x8] sm:$0xf]
  %v1134 = vld [vmem:[%s7 + $0xc] sm:$0xf]
  %v1135 = vld [vmem:[%s7 + $0x10] sm:$0xf]
  %v1136 = vld [vmem:[%s7 + $0x14] sm:$0xf]
  %v1137 = vld [vmem:[%s7 + $0x18] sm:$0xf]
  %v1138 = vld [vmem:[%s7 + $0x1c] sm:$0xf]
  %v1139 = vld [vmem:[%s7 + $0x20] sm:$0xf]
  %v1140 = vld [vmem:[%s7 + $0x24] sm:$0xf]
  %v1141 = vld [vmem:[%s7 + $0x28] sm:$0xf]
  %v1142 = vld [vmem:[%s7 + $0x2c] sm:$0xf]
  %v1143 = vld [vmem:[%s7 + $0x30] sm:$0xf]
  %v1144 = vld [vmem:[%s7 + $0x34] sm:$0xf]
  %v1145 = vld [vmem:[%s7 + $0x38] sm:$0xf]
  %v1146 = vld [vmem:[%s7 + $0x3c] sm:$0xf]
  %v1147 = vld [vmem:[%s8] sm:$0x1]
  %v1149 = vlaneseq
  %v1150 = vshrl.u32 %v1149, 7
  %v1151 = vsub.s32 0, %v1150
  %v1152 = vrot.slane %v1147, %v1151
  %v1170 = vunpack.c.l.b16 %v1131
  %v1171 = vunpack.c.l.b16 %v1132
  %v1172 = vunpack.c.l.b16 %v1133
  %v1173 = vunpack.c.l.b16 %v1134
  %v1174 = vunpack.c.l.b16 %v1135
  %v1175 = vunpack.c.l.b16 %v1136
  %v1176 = vunpack.c.l.b16 %v1137
  %v1177 = vunpack.c.l.b16 %v1138
  %v1178 = vunpack.c.l.b16 %v1139
  %v1179 = vunpack.c.l.b16 %v1140
  %v1180 = vunpack.c.l.b16 %v1141
  %v1181 = vunpack.c.l.b16 %v1142
  %v1182 = vunpack.c.l.b16 %v1143
  %v1183 = vunpack.c.l.b16 %v1144
  %v1184 = vunpack.c.l.b16 %v1145
  %v1185 = vunpack.c.l.b16 %v1146
  %v1186 = vpack.c.b16 %v1171, %v1170
  %v1187 = vpack.c.b16 %v1173, %v1172
  %v1188 = vpack.c.b16 %v1175, %v1174
  %v1189 = vpack.c.b16 %v1177, %v1176
  %v1190 = vpack.c.b16 %v1179, %v1178
  %v1191 = vpack.c.b16 %v1181, %v1180
  %v1192 = vpack.c.b16 %v1183, %v1182
  %v1193 = vpack.c.b16 %v1185, %v1184
  %1202 = vmatprep.subr.bf16.mxu0 0
  %1203 = vmatpush1.bf16.msra.mxu0 %v1186
  %1204 = vmatprep.subr.bf16.mxu0 0
  %1205 = vmatpush1.bf16.msra.mxu0 %v1187
  %1206 = vmatprep.subr.bf16.mxu0 0
  %1207 = vmatpush1.bf16.msra.mxu0 %v1188
  %1208 = vmatprep.subr.bf16.mxu0 0
  %1209 = vmatpush1.bf16.msra.mxu0 %v1189
  %1210 = vmatprep.subr.bf16.mxu0 0
  %1211 = vmatpush1.bf16.msra.mxu0 %v1190
  %1212 = vmatprep.subr.bf16.mxu0 0
  %1213 = vmatpush1.bf16.msra.mxu0 %v1191
  %1214 = vmatprep.subr.bf16.mxu0 0
  %1215 = vmatpush1.bf16.msra.mxu0 %v1192
  %1216 = vmatprep.subr.bf16.mxu0 0
  %1217 = vmatpush1.bf16.msra.mxu0 %v1193
  %1218 = vmatprep.subr.bf16.mxu0 0
  %1219 = vmatpush1.bf16.msra.mxu0 0
  %1220 = vmatprep.subr.bf16.mxu0 0
  %1221 = vmatpush1.bf16.msra.mxu0 0
  %1222 = vmatprep.subr.bf16.mxu0 0
  %1223 = vmatpush1.bf16.msra.mxu0 0
  %1224 = vmatprep.subr.bf16.mxu0 0
  %1225 = vmatpush1.bf16.msra.mxu0 0
  %1226 = vmatprep.subr.bf16.mxu0 0
  %1227 = vmatpush1.bf16.msra.mxu0 0
  %1228 = vmatprep.subr.bf16.mxu0 0
  %1229 = vmatpush1.bf16.msra.mxu0 0
  %1230 = vmatprep.subr.bf16.mxu0 0
  %1231 = vmatpush1.bf16.msra.mxu0 0
  %1232 = vmatprep.subr.bf16.mxu0 0
  %1233 = vmatpush1.bf16.msra.mxu0 0
  %1234 = vmatprep.mubr.bf16.mxu0 0
  %1235 = vmatmul.mubr.bf16.gmra.mrb[0].mxu0 %v1127
  %v1236 = vpop.f32.mrb[0].mxu0
  %v1237 = vadd.f32 %v1152, %v1236
  %v1238 = vpop.f32.mrb[0].mxu0
  %v1239 = vpop.f32.mrb[0].mxu0
  %v1240 = vadd.f32 %v1152, %v1239
  %v1241 = vpop.f32.mrb[0].mxu0
  %1242 = vmatprep.mubr.bf16.mxu0 0
  %1243 = vmatmul.mubr.bf16.gmra.mrb[0].mxu0 %v1128
  %v1244 = vpop.f32.mrb[0].mxu0
  %v1245 = vadd.f32 %v1152, %v1244
  %v1246 = vpop.f32.mrb[0].mxu0
  %v1247 = vpop.f32.mrb[0].mxu0
  %v1248 = vadd.f32 %v1152, %v1247
  %v1249 = vpop.f32.mrb[0].mxu0
  %1250 = vmatprep.mubr.bf16.mxu0 0
  %1251 = vmatmul.mubr.bf16.gmra.mrb[0].mxu0 %v1129
  %v1252 = vpop.f32.mrb[0].mxu0
  %v1253 = vadd.f32 %v1152, %v1252
  %v1254 = vpop.f32.mrb[0].mxu0
  %v1255 = vpop.f32.mrb[0].mxu0
  %v1256 = vadd.f32 %v1152, %v1255
  %v1257 = vpop.f32.mrb[0].mxu0
  %1258 = vmatprep.mubr.bf16.mxu0 0
  %1259 = vmatmul.mubr.bf16.gmra.mrb[0].mxu0 %v1130
  %v1260 = vpop.f32.mrb[0].mxu0
  %v1261 = vadd.f32 %v1152, %v1260
  %v1262 = vpop.f32.mrb[0].mxu0
  %v1263 = vpop.f32.mrb[0].mxu0
  %v1264 = vadd.f32 %v1152, %v1263
  %v1265 = vpop.f32.mrb[0].mxu0
  %1266 = vdwg.mxu0
  %v1267 = vld [vmem:[%s2] sm:$0xff]
  %v1268 = vadd.f32 %v1237, %v1267
  %v1269 = vadd.f32 %v1240, %v1267
  %v1270 = vadd.f32 %v1245, %v1267
  %v1271 = vadd.f32 %v1248, %v1267
  %v1272 = vadd.f32 %v1253, %v1267
  %v1273 = vadd.f32 %v1256, %v1267
  %v1274 = vadd.f32 %v1261, %v1267
  %v1275 = vadd.f32 %v1264, %v1267
  %vm1276 = vcmask 72704
  %1277 = vst.msk [vmem:[%s9] sm:$0xff] %vm1276, %v1268
  %1278 = vst.msk [vmem:[%s9 + $0x8] sm:$0xff] %vm1276, %v1269
  %1279 = vst.msk [vmem:[%s9 + $0x10] sm:$0xff] %vm1276, %v1270
  %1280 = vst.msk [vmem:[%s9 + $0x18] sm:$0xff] %vm1276, %v1271
  %1281 = vst.msk [vmem:[%s9 + $0x20] sm:$0xff] %vm1276, %v1272
  %1282 = vst.msk [vmem:[%s9 + $0x28] sm:$0xff] %vm1276, %v1273
  %1283 = vst.msk [vmem:[%s9 + $0x30] sm:$0xff] %vm1276, %v1274
  %1284 = vst.msk [vmem:[%s9 + $0x38] sm:$0xff] %vm1276, %v1275
  // Predicated region
  $region38: #{d4d_posing_forward.3} parent=0 // pred_check
    _
  $region39: #{d4d_posing_forward.3} parent=0 // pred_check_branch
    %1286 = sbr.rel (0) target = $region41
  $region40: #{d4d_posing_forward.3} parent=0 // pred_region
    _
  $region41: #{d4d_posing_forward.3} parent=0 // pred_fallthru
    _
  // Predicated region
  $region42: #{d4d_posing_forward.3} parent=0 // pred_check
    _
  $region43: #{d4d_posing_forward.3} parent=0 // pred_check_branch
    %1288 = sbr.rel (0) target = $region45
  $region44: #{d4d_posing_forward.3} parent=0 // pred_region
    _
  $region45: #{d4d_posing_forward.3} parent=0 // pred_fallthru
    _

</llo_original>
